<compile_context>
chip_gen: v5e
topology: v5e:2x2
jax: 0.10.0
libtpu: 0.0.40
codegen_flags: <defaults>
</compile_context>

<pallas_src>
import jax
import jax.numpy as jnp
from jax.experimental import pallas as pl
from jax.experimental.pallas import tpu as pltpu

_LANE = 128


def _round_up(x, m):
    return (x + m - 1) // m * m


def _down_kernel(x_ref, w1_ref, s1_ref, t1_ref, w2_ref, s2_ref, t2_ref,
                 out_ref, pad1_ref, pad2_ref):
    """Fused MaxPool2d(2,2) + (Conv3x3/pad1 -> BN -> ReLU) x2 for one batch element.

    x_ref    : (1, Hh, 2, Wh, 2*Cin_p) f32  -- 2x2 pool windows, dx packed in lanes
    w*_ref   : (9*C_in_p, C_out_p)     bf16 -- HWIO weights reshaped for im2col
    s*/t*_ref: (1, C_out_p)            f32  -- folded conv-bias + BatchNorm scale/shift
    out_ref  : (1, Hh, Wh, C_out_p)    f32
    pad*_ref : VMEM scratch (Hh+2, Wh+2, C) f32 zero-padded conv inputs
    """
    Hh = out_ref.shape[1]
    Wh = out_ref.shape[2]
    cin1 = pad1_ref.shape[2]

    # ---- 2x2 max pool (f32 on the VPU; lane-dense slices of the input block) ----
    a = x_ref[0, :, 0, :, :cin1]
    b = x_ref[0, :, 0, :, cin1:]
    c = x_ref[0, :, 1, :, :cin1]
    d = x_ref[0, :, 1, :, cin1:]
    pooled = jnp.maximum(jnp.maximum(a, b), jnp.maximum(c, d))   # (Hh, Wh, cin1)

    def conv_bn_relu(pad_ref, inp, w_ref, s_ref, t_ref):
        cin = pad_ref.shape[2]
        # Rebuild only the 1-pixel zero halo (cheap) and write the interior.
        # The halo is rewritten every step, so correctness does not depend on
        # which core ran step 0 (scratch is per-TensorCore).
        zrow = jnp.zeros((1, Wh + 2, cin), jnp.float32)
        zcol = jnp.zeros((Hh, 1, cin), jnp.float32)
        pad_ref[0:1, :, :] = zrow
        pad_ref[Hh + 1:Hh + 2, :, :] = zrow
        pad_ref[1:Hh + 1, 0:1, :] = zcol
        pad_ref[1:Hh + 1, Wh + 1:Wh + 2, :] = zcol
        pad_ref[1:Hh + 1, 1:Wh + 1, :] = inp

        # im2col: 9 shifted windows concatenated along lanes -> ONE MXU matmul
        # (bf16 operands, f32 accumulation).
        taps = [
            pad_ref[dy:dy + Hh, dx:dx + Wh, :]
            .reshape(Hh * Wh, cin)
            .astype(jnp.bfloat16)
            for dy in range(3) for dx in range(3)
        ]
        col = jnp.concatenate(taps, axis=-1)                     # (Hh*Wh, 9*cin) bf16
        acc = jnp.dot(col, w_ref[...],
                      preferred_element_type=jnp.float32)        # (Hh*Wh, cout) f32
        y = acc * s_ref[...] + t_ref[...]                        # folded bias + BN (f32)
        return jnp.maximum(y, 0.0)                               # ReLU

    h1 = conv_bn_relu(pad1_ref, pooled, w1_ref, s1_ref, t1_ref)
    cout1 = w1_ref.shape[1]
    h2 = conv_bn_relu(pad2_ref, h1.reshape(Hh, Wh, cout1), w2_ref, s2_ref, t2_ref)
    out_ref[0] = h2.reshape(Hh, Wh, w2_ref.shape[1]).astype(out_ref.dtype)


def down_forward(x_nchw, params):
    (w1, b1, g1, be1, m1, v1, w2, b2, g2, be2, m2, v2) = params
    eps = 1e-5
    # Fold conv bias into the BatchNorm shift:  y = conv(x) * s + t
    s1 = g1 / jnp.sqrt(v1 + eps)
    t1 = be1 + (b1 - m1) * s1
    s2 = g2 / jnp.sqrt(v2 + eps)
    t2 = be2 + (b2 - m2) * s2

    N, Cin, H, W = x_nchw.shape
    Cout = w1.shape[3]
    Hh, Wh = H // 2, W // 2
    Cin_p = _round_up(Cin, _LANE)
    Cout_p = _round_up(Cout, _LANE)

    # NCHW -> NHWC, pad channels to a lane multiple, expose 2x2 pool windows
    # with the pool's dx packed into the lane dim (glue).
    x = jnp.transpose(x_nchw, (0, 2, 3, 1)).astype(jnp.float32)
    x = jnp.pad(x, ((0, 0), (0, 0), (0, 0), (0, Cin_p - Cin)))
    x = x.reshape(N, Hh, 2, Wh, 2 * Cin_p)

    def prep_w(w, cin_p, cout_p):
        ci, co = w.shape[2], w.shape[3]
        wp = jnp.pad(w, ((0, 0), (0, 0), (0, cin_p - ci), (0, cout_p - co)))
        return wp.reshape(9 * cin_p, cout_p).astype(jnp.bfloat16)

    def prep_v(v, cout_p):
        return jnp.pad(v, (0, cout_p - v.shape[0])).reshape(1, cout_p).astype(jnp.float32)

    w1p = prep_w(w1, Cin_p, Cout_p)
    w2p = prep_w(w2, Cout_p, Cout_p)

    grid_spec = pltpu.PrefetchScalarGridSpec(
        num_scalar_prefetch=0,
        grid=(N,),
        in_specs=[
            pl.BlockSpec((1, Hh, 2, Wh, 2 * Cin_p), lambda n: (n, 0, 0, 0, 0)),
            pl.BlockSpec((9 * Cin_p, Cout_p), lambda n: (0, 0)),
            pl.BlockSpec((1, Cout_p), lambda n: (0, 0)),
            pl.BlockSpec((1, Cout_p), lambda n: (0, 0)),
            pl.BlockSpec((9 * Cout_p, Cout_p), lambda n: (0, 0)),
            pl.BlockSpec((1, Cout_p), lambda n: (0, 0)),
            pl.BlockSpec((1, Cout_p), lambda n: (0, 0)),
        ],
        out_specs=pl.BlockSpec((1, Hh, Wh, Cout_p), lambda n: (n, 0, 0, 0)),
        scratch_shapes=[
            pltpu.VMEM((Hh + 2, Wh + 2, Cin_p), jnp.float32),
            pltpu.VMEM((Hh + 2, Wh + 2, Cout_p), jnp.float32),
        ],
    )

    out_nhwc = pl.pallas_call(
        _down_kernel,
        out_shape=jax.ShapeDtypeStruct((N, Hh, Wh, Cout_p), jnp.float32),
        grid_spec=grid_spec,
        compiler_params=pltpu.CompilerParams(
            dimension_semantics=("parallel",),        # batch axis shards across TCs on v7x
            vmem_limit_bytes=64 * 1024 * 1024,
        ),
    )(x, w1p, prep_v(s1, Cout_p), prep_v(t1, Cout_p),
      w2p, prep_v(s2, Cout_p), prep_v(t2, Cout_p))

    out_nhwc = out_nhwc[:, :, :, :Cout]               # drop channel padding
    return jnp.transpose(out_nhwc, (0, 3, 1, 2))      # NHWC -> NCHW


def init_params(key, cin, cout):
    ks = jax.random.split(key, 12)
    w1 = 0.2 * jax.random.normal(ks[0], (3, 3, cin, cout), jnp.float32)
    b1 = 0.1 * jax.random.normal(ks[1], (cout,), jnp.float32)
    g1 = 1.0 + 0.1 * jax.random.normal(ks[2], (cout,), jnp.float32)
    be1 = 0.1 * jax.random.normal(ks[3], (cout,), jnp.float32)
    m1 = 0.1 * jax.random.normal(ks[4], (cout,), jnp.float32)
    v1 = jax.random.uniform(ks[5], (cout,), jnp.float32, 0.5, 1.5)
    w2 = 0.2 * jax.random.normal(ks[6], (3, 3, cout, cout), jnp.float32)
    b2 = 0.1 * jax.random.normal(ks[7], (cout,), jnp.float32)
    g2 = 1.0 + 0.1 * jax.random.normal(ks[8], (cout,), jnp.float32)
    be2 = 0.1 * jax.random.normal(ks[9], (cout,), jnp.float32)
    m2 = 0.1 * jax.random.normal(ks[10], (cout,), jnp.float32)
    v2 = jax.random.uniform(ks[11], (cout,), jnp.float32, 0.5, 1.5)
    return (w1, b1, g1, be1, m1, v1, w2, b2, g2, be2, m2, v2)


def ref_forward(x_nchw, params):
    """Pure-JAX reference (maxpool + conv + eval-mode BN + relu).

    Conv operands are cast to bf16 (f32 accumulation) to mirror the kernel's
    MXU precision, so only accumulation-order differences remain.
    """
    (w1, b1, g1, be1, m1, v1, w2, b2, g2, be2, m2, v2) = params
    eps = 1e-5
    x = jnp.transpose(x_nchw, (0, 2, 3, 1))
    N, H, W, C = x.shape
    xp = x.reshape(N, H // 2, 2, W // 2, 2, C).max(axis=(2, 4))

    def block(h, w, b, g, be, m, v):
        y = jax.lax.conv_general_dilated(
            h.astype(jnp.bfloat16), w.astype(jnp.bfloat16),
            window_strides=(1, 1), padding="SAME",
            dimension_numbers=("NHWC", "HWIO", "NHWC"),
            preferred_element_type=jnp.float32)
        y = y + b
        s = g / jnp.sqrt(v + eps)
        y = (y - m) * s + be
        return jnp.maximum(y, 0.0)

    h = block(xp, w1, b1, g1, be1, m1, v1)
    h = block(h, w2, b2, g2, be2, m2, v2)
    return jnp.transpose(h, (0, 3, 1, 2))


if __name__ == "__main__":
    key = jax.random.PRNGKey(0)
    kx, kp = jax.random.split(key)
    N, Cin, Cout, H, W = 2, 4, 8, 16, 16
    x = jax.random.normal(kx, (N, Cin, H, W), jnp.float32)
    params = init_params(kp, Cin, Cout)

    out = jax.block_until_ready(down_forward(x, params))
    ref = ref_forward(x, params)

    assert out.shape == (N, Cout, H // 2, W // 2), out.shape
    err = float(jnp.max(jnp.abs(out - ref)))
    # bf16 matmul operands (kernel and reference) -> tolerance above pure-f32.
    if not jnp.allclose(out, ref, atol=2e-2, rtol=2e-2):
        raise AssertionError(f"mismatch vs reference, max abs err = {err:e}")
    print("KERNEL_OK")
</pallas_src>

<mosaic_0001>
module attributes {stable_mosaic.version = 11 : i64} {
  func.func @_down_kernel(%arg0: i32, %arg1: memref<1x8x2x8x256xf32, #tpu.memory_space<vmem>>, %arg2: memref<1152x128xbf16, #tpu.memory_space<vmem>>, %arg3: memref<1x128xf32, #tpu.memory_space<vmem>>, %arg4: memref<1x128xf32, #tpu.memory_space<vmem>>, %arg5: memref<1152x128xbf16, #tpu.memory_space<vmem>>, %arg6: memref<1x128xf32, #tpu.memory_space<vmem>>, %arg7: memref<1x128xf32, #tpu.memory_space<vmem>>, %arg8: memref<1x8x8x128xf32, #tpu.memory_space<vmem>>, %arg9: memref<10x10x128xf32, #tpu.memory_space<vmem>>, %arg10: memref<10x10x128xf32, #tpu.memory_space<vmem>>) attributes {dimension_semantics = [#tpu.dimension_semantics<parallel>], iteration_bounds = array<i64: 2>, scalar_prefetch = 0 : i64, scratch_operands = 2 : i64, tpu.core_type = #tpu.core_type<tc>, window_params = [{transform_indices = @transform_0, window_bounds = array<i64: 1, 8, 2, 8, 256>}, {pipeline_mode = #tpu.pipeline_mode<synchronous>, transform_indices = @transform_1, window_bounds = array<i64: 1152, 128>}, {pipeline_mode = #tpu.pipeline_mode<synchronous>, transform_indices = @transform_2, window_bounds = array<i64: 1, 128>}, {pipeline_mode = #tpu.pipeline_mode<synchronous>, transform_indices = @transform_3, window_bounds = array<i64: 1, 128>}, {pipeline_mode = #tpu.pipeline_mode<synchronous>, transform_indices = @transform_4, window_bounds = array<i64: 1152, 128>}, {pipeline_mode = #tpu.pipeline_mode<synchronous>, transform_indices = @transform_5, window_bounds = array<i64: 1, 128>}, {pipeline_mode = #tpu.pipeline_mode<synchronous>, transform_indices = @transform_6, window_bounds = array<i64: 1, 128>}, {transform_indices = @transform_7, window_bounds = array<i64: 1, 8, 8, 128>}]} {
    %c0 = arith.constant 0 : index
    %c0_0 = arith.constant 0 : index
    %c0_1 = arith.constant 0 : index
    %c0_2 = arith.constant 0 : index
    %c0_3 = arith.constant 0 : index
    %0 = vector.load %arg1[%c0, %c0_0, %c0_1, %c0_2, %c0_3] : memref<1x8x2x8x256xf32, #tpu.memory_space<vmem>>, vector<1x8x1x8x128xf32>
    %1 = vector.shape_cast %0 : vector<1x8x1x8x128xf32> to vector<8x8x128xf32>
    %c0_4 = arith.constant 0 : index
    %c0_5 = arith.constant 0 : index
    %c0_6 = arith.constant 0 : index
    %c0_7 = arith.constant 0 : index
    %c128 = arith.constant 128 : index
    %2 = vector.load %arg1[%c0_4, %c0_5, %c0_6, %c0_7, %c128] : memref<1x8x2x8x256xf32, #tpu.memory_space<vmem>>, vector<1x8x1x8x128xf32>
    %3 = vector.shape_cast %2 : vector<1x8x1x8x128xf32> to vector<8x8x128xf32>
    %c0_8 = arith.constant 0 : index
    %c0_9 = arith.constant 0 : index
    %c1 = arith.constant 1 : index
    %c0_10 = arith.constant 0 : index
    %c0_11 = arith.constant 0 : index
    %4 = vector.load %arg1[%c0_8, %c0_9, %c1, %c0_10, %c0_11] : memref<1x8x2x8x256xf32, #tpu.memory_space<vmem>>, vector<1x8x1x8x128xf32>
    %5 = vector.shape_cast %4 : vector<1x8x1x8x128xf32> to vector<8x8x128xf32>
    %c0_12 = arith.constant 0 : index
    %c0_13 = arith.constant 0 : index
    %c1_14 = arith.constant 1 : index
    %c0_15 = arith.constant 0 : index
    %c128_16 = arith.constant 128 : index
    %6 = vector.load %arg1[%c0_12, %c0_13, %c1_14, %c0_15, %c128_16] : memref<1x8x2x8x256xf32, #tpu.memory_space<vmem>>, vector<1x8x1x8x128xf32>
    %7 = vector.shape_cast %6 : vector<1x8x1x8x128xf32> to vector<8x8x128xf32>
    %8 = arith.maximumf %1, %3 : vector<8x8x128xf32>
    %9 = arith.maximumf %5, %7 : vector<8x8x128xf32>
    %10 = arith.maximumf %8, %9 : vector<8x8x128xf32>
    %cst = arith.constant 0.000000e+00 : f32
    %11 = vector.broadcast %cst : f32 to vector<1x10x128xf32>
    %cst_17 = arith.constant 0.000000e+00 : f32
    %12 = vector.broadcast %cst_17 : f32 to vector<8x1x128xf32>
    %c0_18 = arith.constant 0 : index
    %c0_19 = arith.constant 0 : index
    %c0_20 = arith.constant 0 : index
    %13 = vector.load %arg9[%c0_18, %c0_19, %c0_20] : memref<10x10x128xf32, #tpu.memory_space<vmem>>, vector<1x10x128xf32>
    tpu.vector_store %arg9[%c0_18, %c0_19, %c0_20], %11 {strides = array<i32>} : memref<10x10x128xf32, #tpu.memory_space<vmem>>, vector<1x10x128xf32>,
    %c9 = arith.constant 9 : index
    %c0_21 = arith.constant 0 : index
    %c0_22 = arith.constant 0 : index
    %14 = vector.load %arg9[%c9, %c0_21, %c0_22] : memref<10x10x128xf32, #tpu.memory_space<vmem>>, vector<1x10x128xf32>
    tpu.vector_store %arg9[%c9, %c0_21, %c0_22], %11 {strides = array<i32>} : memref<10x10x128xf32, #tpu.memory_space<vmem>>, vector<1x10x128xf32>,
    %c1_23 = arith.constant 1 : index
    %c0_24 = arith.constant 0 : index
    %c0_25 = arith.constant 0 : index
    %15 = vector.load %arg9[%c1_23, %c0_24, %c0_25] : memref<10x10x128xf32, #tpu.memory_space<vmem>>, vector<8x1x128xf32>
    tpu.vector_store %arg9[%c1_23, %c0_24, %c0_25], %12 {strides = array<i32>} : memref<10x10x128xf32, #tpu.memory_space<vmem>>, vector<8x1x128xf32>,
    %c1_26 = arith.constant 1 : index
    %c9_27 = arith.constant 9 : index
    %c0_28 = arith.constant 0 : index
    %16 = vector.load %arg9[%c1_26, %c9_27, %c0_28] : memref<10x10x128xf32, #tpu.memory_space<vmem>>, vector<8x1x128xf32>
    tpu.vector_store %arg9[%c1_26, %c9_27, %c0_28], %12 {strides = array<i32>} : memref<10x10x128xf32, #tpu.memory_space<vmem>>, vector<8x1x128xf32>,
    %c1_29 = arith.constant 1 : index
    %c1_30 = arith.constant 1 : index
    %c0_31 = arith.constant 0 : index
    %17 = vector.load %arg9[%c1_29, %c1_30, %c0_31] : memref<10x10x128xf32, #tpu.memory_space<vmem>>, vector<8x8x128xf32>
    tpu.vector_store %arg9[%c1_29, %c1_30, %c0_31], %10 {strides = array<i32>} : memref<10x10x128xf32, #tpu.memory_space<vmem>>, vector<8x8x128xf32>,
    %c0_32 = arith.constant 0 : index
    %c0_33 = arith.constant 0 : index
    %c0_34 = arith.constant 0 : index
    %18 = vector.load %arg9[%c0_32, %c0_33, %c0_34] : memref<10x10x128xf32, #tpu.memory_space<vmem>>, vector<8x8x128xf32>
    %19 = vector.shape_cast %18 : vector<8x8x128xf32> to vector<64x128xf32>
    %20 = arith.truncf %19 : vector<64x128xf32> to vector<64x128xbf16>
    %c0_35 = arith.constant 0 : index
    %c1_36 = arith.constant 1 : index
    %c0_37 = arith.constant 0 : index
    %21 = vector.load %arg9[%c0_35, %c1_36, %c0_37] : memref<10x10x128xf32, #tpu.memory_space<vmem>>, vector<8x8x128xf32>
    %22 = vector.shape_cast %21 : vector<8x8x128xf32> to vector<64x128xf32>
    %23 = arith.truncf %22 : vector<64x128xf32> to vector<64x128xbf16>
    %c0_38 = arith.constant 0 : index
    %c2 = arith.constant 2 : index
    %c0_39 = arith.constant 0 : index
    %24 = vector.load %arg9[%c0_38, %c2, %c0_39] : memref<10x10x128xf32, #tpu.memory_space<vmem>>, vector<8x8x128xf32>
    %25 = vector.shape_cast %24 : vector<8x8x128xf32> to vector<64x128xf32>
    %26 = arith.truncf %25 : vector<64x128xf32> to vector<64x128xbf16>
    %c1_40 = arith.constant 1 : index
    %c0_41 = arith.constant 0 : index
    %c0_42 = arith.constant 0 : index
    %27 = vector.load %arg9[%c1_40, %c0_41, %c0_42] : memref<10x10x128xf32, #tpu.memory_space<vmem>>, vector<8x8x128xf32>
    %28 = vector.shape_cast %27 : vector<8x8x128xf32> to vector<64x128xf32>
    %29 = arith.truncf %28 : vector<64x128xf32> to vector<64x128xbf16>
    %c1_43 = arith.constant 1 : index
    %c1_44 = arith.constant 1 : index
    %c0_45 = arith.constant 0 : index
    %30 = vector.load %arg9[%c1_43, %c1_44, %c0_45] : memref<10x10x128xf32, #tpu.memory_space<vmem>>, vector<8x8x128xf32>
    %31 = vector.shape_cast %30 : vector<8x8x128xf32> to vector<64x128xf32>
    %32 = arith.truncf %31 : vector<64x128xf32> to vector<64x128xbf16>
    %c1_46 = arith.constant 1 : index
    %c2_47 = arith.constant 2 : index
    %c0_48 = arith.constant 0 : index
    %33 = vector.load %arg9[%c1_46, %c2_47, %c0_48] : memref<10x10x128xf32, #tpu.memory_space<vmem>>, vector<8x8x128xf32>
    %34 = vector.shape_cast %33 : vector<8x8x128xf32> to vector<64x128xf32>
    %35 = arith.truncf %34 : vector<64x128xf32> to vector<64x128xbf16>
    %c2_49 = arith.constant 2 : index
    %c0_50 = arith.constant 0 : index
    %c0_51 = arith.constant 0 : index
    %36 = vector.load %arg9[%c2_49, %c0_50, %c0_51] : memref<10x10x128xf32, #tpu.memory_space<vmem>>, vector<8x8x128xf32>
    %37 = vector.shape_cast %36 : vector<8x8x128xf32> to vector<64x128xf32>
    %38 = arith.truncf %37 : vector<64x128xf32> to vector<64x128xbf16>
    %c2_52 = arith.constant 2 : index
    %c1_53 = arith.constant 1 : index
    %c0_54 = arith.constant 0 : index
    %39 = vector.load %arg9[%c2_52, %c1_53, %c0_54] : memref<10x10x128xf32, #tpu.memory_space<vmem>>, vector<8x8x128xf32>
    %40 = vector.shape_cast %39 : vector<8x8x128xf32> to vector<64x128xf32>
    %41 = arith.truncf %40 : vector<64x128xf32> to vector<64x128xbf16>
    %c2_55 = arith.constant 2 : index
    %c2_56 = arith.constant 2 : index
    %c0_57 = arith.constant 0 : index
    %42 = vector.load %arg9[%c2_55, %c2_56, %c0_57] : memref<10x10x128xf32, #tpu.memory_space<vmem>>, vector<8x8x128xf32>
    %43 = vector.shape_cast %42 : vector<8x8x128xf32> to vector<64x128xf32>
    %44 = arith.truncf %43 : vector<64x128xf32> to vector<64x128xbf16>
    %45 = tpu.concatenate %20, %23, %26, %29, %32, %35, %38, %41, %44 in 1 : vector<64x128xbf16>, vector<64x128xbf16>, vector<64x128xbf16>, vector<64x128xbf16>, vector<64x128xbf16>, vector<64x128xbf16>, vector<64x128xbf16>, vector<64x128xbf16>, vector<64x128xbf16> -> vector<64x1152xbf16>
    %c0_58 = arith.constant 0 : index
    %c0_59 = arith.constant 0 : index
    %46 = vector.load %arg2[%c0_58, %c0_59] : memref<1152x128xbf16, #tpu.memory_space<vmem>>, vector<1152x128xbf16>
    %cst_60 = arith.constant dense<0.000000e+00> : vector<64x128xf32>
    %47 = tpu.matmul %45, %46, %cst_60 {dimension_numbers = #tpu.dot_dimension_numbers<[1], [0], [0], [1], [0, 0, 1, 1], [], []>} : vector<64x1152xbf16>, vector<1152x128xbf16>, vector<64x128xf32> -> vector<64x128xf32>
    %c0_61 = arith.constant 0 : index
    %c0_62 = arith.constant 0 : index
    %48 = vector.load %arg3[%c0_61, %c0_62] : memref<1x128xf32, #tpu.memory_space<vmem>>, vector<1x128xf32>
    %49 = vector.broadcast %48 : vector<1x128xf32> to vector<64x128xf32>
    %50 = arith.mulf %47, %49 : vector<64x128xf32>
    %c0_63 = arith.constant 0 : index
    %c0_64 = arith.constant 0 : index
    %51 = vector.load %arg4[%c0_63, %c0_64] : memref<1x128xf32, #tpu.memory_space<vmem>>, vector<1x128xf32>
    %52 = vector.broadcast %51 : vector<1x128xf32> to vector<64x128xf32>
    %53 = arith.addf %50, %52 : vector<64x128xf32>
    %cst_65 = arith.constant 0.000000e+00 : f32
    %54 = vector.broadcast %cst_65 : f32 to vector<64x128xf32>
    %55 = arith.maximumf %53, %54 : vector<64x128xf32>
    %56 = vector.shape_cast %55 : vector<64x128xf32> to vector<8x8x128xf32>
    %cst_66 = arith.constant 0.000000e+00 : f32
    %57 = vector.broadcast %cst_66 : f32 to vector<1x10x128xf32>
    %cst_67 = arith.constant 0.000000e+00 : f32
    %58 = vector.broadcast %cst_67 : f32 to vector<8x1x128xf32>
    %c0_68 = arith.constant 0 : index
    %c0_69 = arith.constant 0 : index
    %c0_70 = arith.constant 0 : index
    %59 = vector.load %arg10[%c0_68, %c0_69, %c0_70] : memref<10x10x128xf32, #tpu.memory_space<vmem>>, vector<1x10x128xf32>
    tpu.vector_store %arg10[%c0_68, %c0_69, %c0_70], %57 {strides = array<i32>} : memref<10x10x128xf32, #tpu.memory_space<vmem>>, vector<1x10x128xf32>,
    %c9_71 = arith.constant 9 : index
    %c0_72 = arith.constant 0 : index
    %c0_73 = arith.constant 0 : index
    %60 = vector.load %arg10[%c9_71, %c0_72, %c0_73] : memref<10x10x128xf32, #tpu.memory_space<vmem>>, vector<1x10x128xf32>
    tpu.vector_store %arg10[%c9_71, %c0_72, %c0_73], %57 {strides = array<i32>} : memref<10x10x128xf32, #tpu.memory_space<vmem>>, vector<1x10x128xf32>,
    %c1_74 = arith.constant 1 : index
    %c0_75 = arith.constant 0 : index
    %c0_76 = arith.constant 0 : index
    %61 = vector.load %arg10[%c1_74, %c0_75, %c0_76] : memref<10x10x128xf32, #tpu.memory_space<vmem>>, vector<8x1x128xf32>
    tpu.vector_store %arg10[%c1_74, %c0_75, %c0_76], %58 {strides = array<i32>} : memref<10x10x128xf32, #tpu.memory_space<vmem>>, vector<8x1x128xf32>,
    %c1_77 = arith.constant 1 : index
    %c9_78 = arith.constant 9 : index
    %c0_79 = arith.constant 0 : index
    %62 = vector.load %arg10[%c1_77, %c9_78, %c0_79] : memref<10x10x128xf32, #tpu.memory_space<vmem>>, vector<8x1x128xf32>
    tpu.vector_store %arg10[%c1_77, %c9_78, %c0_79], %58 {strides = array<i32>} : memref<10x10x128xf32, #tpu.memory_space<vmem>>, vector<8x1x128xf32>,
    %c1_80 = arith.constant 1 : index
    %c1_81 = arith.constant 1 : index
    %c0_82 = arith.constant 0 : index
    %63 = vector.load %arg10[%c1_80, %c1_81, %c0_82] : memref<10x10x128xf32, #tpu.memory_space<vmem>>, vector<8x8x128xf32>
    tpu.vector_store %arg10[%c1_80, %c1_81, %c0_82], %56 {strides = array<i32>} : memref<10x10x128xf32, #tpu.memory_space<vmem>>, vector<8x8x128xf32>,
    %c0_83 = arith.constant 0 : index
    %c0_84 = arith.constant 0 : index
    %c0_85 = arith.constant 0 : index
    %64 = vector.load %arg10[%c0_83, %c0_84, %c0_85] : memref<10x10x128xf32, #tpu.memory_space<vmem>>, vector<8x8x128xf32>
    %65 = vector.shape_cast %64 : vector<8x8x128xf32> to vector<64x128xf32>
    %66 = arith.truncf %65 : vector<64x128xf32> to vector<64x128xbf16>
    %c0_86 = arith.constant 0 : index
    %c1_87 = arith.constant 1 : index
    %c0_88 = arith.constant 0 : index
    %67 = vector.load %arg10[%c0_86, %c1_87, %c0_88] : memref<10x10x128xf32, #tpu.memory_space<vmem>>, vector<8x8x128xf32>
    %68 = vector.shape_cast %67 : vector<8x8x128xf32> to vector<64x128xf32>
    %69 = arith.truncf %68 : vector<64x128xf32> to vector<64x128xbf16>
    %c0_89 = arith.constant 0 : index
    %c2_90 = arith.constant 2 : index
    %c0_91 = arith.constant 0 : index
    %70 = vector.load %arg10[%c0_89, %c2_90, %c0_91] : memref<10x10x128xf32, #tpu.memory_space<vmem>>, vector<8x8x128xf32>
    %71 = vector.shape_cast %70 : vector<8x8x128xf32> to vector<64x128xf32>
    %72 = arith.truncf %71 : vector<64x128xf32> to vector<64x128xbf16>
    %c1_92 = arith.constant 1 : index
    %c0_93 = arith.constant 0 : index
    %c0_94 = arith.constant 0 : index
    %73 = vector.load %arg10[%c1_92, %c0_93, %c0_94] : memref<10x10x128xf32, #tpu.memory_space<vmem>>, vector<8x8x128xf32>
    %74 = vector.shape_cast %73 : vector<8x8x128xf32> to vector<64x128xf32>
    %75 = arith.truncf %74 : vector<64x128xf32> to vector<64x128xbf16>
    %c1_95 = arith.constant 1 : index
    %c1_96 = arith.constant 1 : index
    %c0_97 = arith.constant 0 : index
    %76 = vector.load %arg10[%c1_95, %c1_96, %c0_97] : memref<10x10x128xf32, #tpu.memory_space<vmem>>, vector<8x8x128xf32>
    %77 = vector.shape_cast %76 : vector<8x8x128xf32> to vector<64x128xf32>
    %78 = arith.truncf %77 : vector<64x128xf32> to vector<64x128xbf16>
    %c1_98 = arith.constant 1 : index
    %c2_99 = arith.constant 2 : index
    %c0_100 = arith.constant 0 : index
    %79 = vector.load %arg10[%c1_98, %c2_99, %c0_100] : memref<10x10x128xf32, #tpu.memory_space<vmem>>, vector<8x8x128xf32>
    %80 = vector.shape_cast %79 : vector<8x8x128xf32> to vector<64x128xf32>
    %81 = arith.truncf %80 : vector<64x128xf32> to vector<64x128xbf16>
    %c2_101 = arith.constant 2 : index
    %c0_102 = arith.constant 0 : index
    %c0_103 = arith.constant 0 : index
    %82 = vector.load %arg10[%c2_101, %c0_102, %c0_103] : memref<10x10x128xf32, #tpu.memory_space<vmem>>, vector<8x8x128xf32>
    %83 = vector.shape_cast %82 : vector<8x8x128xf32> to vector<64x128xf32>
    %84 = arith.truncf %83 : vector<64x128xf32> to vector<64x128xbf16>
    %c2_104 = arith.constant 2 : index
    %c1_105 = arith.constant 1 : index
    %c0_106 = arith.constant 0 : index
    %85 = vector.load %arg10[%c2_104, %c1_105, %c0_106] : memref<10x10x128xf32, #tpu.memory_space<vmem>>, vector<8x8x128xf32>
    %86 = vector.shape_cast %85 : vector<8x8x128xf32> to vector<64x128xf32>
    %87 = arith.truncf %86 : vector<64x128xf32> to vector<64x128xbf16>
    %c2_107 = arith.constant 2 : index
    %c2_108 = arith.constant 2 : index
    %c0_109 = arith.constant 0 : index
    %88 = vector.load %arg10[%c2_107, %c2_108, %c0_109] : memref<10x10x128xf32, #tpu.memory_space<vmem>>, vector<8x8x128xf32>
    %89 = vector.shape_cast %88 : vector<8x8x128xf32> to vector<64x128xf32>
    %90 = arith.truncf %89 : vector<64x128xf32> to vector<64x128xbf16>
    %91 = tpu.concatenate %66, %69, %72, %75, %78, %81, %84, %87, %90 in 1 : vector<64x128xbf16>, vector<64x128xbf16>, vector<64x128xbf16>, vector<64x128xbf16>, vector<64x128xbf16>, vector<64x128xbf16>, vector<64x128xbf16>, vector<64x128xbf16>, vector<64x128xbf16> -> vector<64x1152xbf16>
    %c0_110 = arith.constant 0 : index
    %c0_111 = arith.constant 0 : index
    %92 = vector.load %arg5[%c0_110, %c0_111] : memref<1152x128xbf16, #tpu.memory_space<vmem>>, vector<1152x128xbf16>
    %cst_112 = arith.constant dense<0.000000e+00> : vector<64x128xf32>
    %93 = tpu.matmul %91, %92, %cst_112 {dimension_numbers = #tpu.dot_dimension_numbers<[1], [0], [0], [1], [0, 0, 1, 1], [], []>} : vector<64x1152xbf16>, vector<1152x128xbf16>, vector<64x128xf32> -> vector<64x128xf32>
    %c0_113 = arith.constant 0 : index
    %c0_114 = arith.constant 0 : index
    %94 = vector.load %arg6[%c0_113, %c0_114] : memref<1x128xf32, #tpu.memory_space<vmem>>, vector<1x128xf32>
    %95 = vector.broadcast %94 : vector<1x128xf32> to vector<64x128xf32>
    %96 = arith.mulf %93, %95 : vector<64x128xf32>
    %c0_115 = arith.constant 0 : index
    %c0_116 = arith.constant 0 : index
    %97 = vector.load %arg7[%c0_115, %c0_116] : memref<1x128xf32, #tpu.memory_space<vmem>>, vector<1x128xf32>
    %98 = vector.broadcast %97 : vector<1x128xf32> to vector<64x128xf32>
    %99 = arith.addf %96, %98 : vector<64x128xf32>
    %cst_117 = arith.constant 0.000000e+00 : f32
    %100 = vector.broadcast %cst_117 : f32 to vector<64x128xf32>
    %101 = arith.maximumf %99, %100 : vector<64x128xf32>
    %102 = vector.shape_cast %101 : vector<64x128xf32> to vector<8x8x128xf32>
    %c0_118 = arith.constant 0 : index
    %c0_119 = arith.constant 0 : index
    %c0_120 = arith.constant 0 : index
    %c0_121 = arith.constant 0 : index
    %103 = vector.load %arg8[%c0_118, %c0_119, %c0_120, %c0_121] : memref<1x8x8x128xf32, #tpu.memory_space<vmem>>, vector<1x8x8x128xf32>
    %104 = vector.shape_cast %103 : vector<1x8x8x128xf32> to vector<8x8x128xf32>
    %105 = vector.shape_cast %102 : vector<8x8x128xf32> to vector<1x8x8x128xf32>
    tpu.vector_store %arg8[%c0_118, %c0_119, %c0_120, %c0_121], %105 {strides = array<i32>} : memref<1x8x8x128xf32, #tpu.memory_space<vmem>>, vector<1x8x8x128xf32>,
    return
  }
  func.func @transform_0(%arg0: i32) -> (i32, i32, i32, i32, i32) {
    %c0_i32 = arith.constant 0 : i32
    %c0_i32_0 = arith.constant 0 : i32
    %c0_i32_1 = arith.constant 0 : i32
    %c0_i32_2 = arith.constant 0 : i32
    %c0_i32_3 = arith.constant 0 : i32
    return %arg0, %c0_i32, %c0_i32_0, %c0_i32_1, %c0_i32_2 : i32, i32, i32, i32, i32
  }
  func.func @transform_1(%arg0: i32) -> (i32, i32) {
    %c0_i32 = arith.constant 0 : i32
    %c0_i32_0 = arith.constant 0 : i32
    %c0_i32_1 = arith.constant 0 : i32
    return %c0_i32, %c0_i32_0 : i32, i32
  }
  func.func @transform_2(%arg0: i32) -> (i32, i32) {
    %c0_i32 = arith.constant 0 : i32
    %c0_i32_0 = arith.constant 0 : i32
    %c0_i32_1 = arith.constant 0 : i32
    return %c0_i32, %c0_i32_0 : i32, i32
  }
  func.func @transform_3(%arg0: i32) -> (i32, i32) {
    %c0_i32 = arith.constant 0 : i32
    %c0_i32_0 = arith.constant 0 : i32
    %c0_i32_1 = arith.constant 0 : i32
    return %c0_i32, %c0_i32_0 : i32, i32
  }
  func.func @transform_4(%arg0: i32) -> (i32, i32) {
    %c0_i32 = arith.constant 0 : i32
    %c0_i32_0 = arith.constant 0 : i32
    %c0_i32_1 = arith.constant 0 : i32
    return %c0_i32, %c0_i32_0 : i32, i32
  }
  func.func @transform_5(%arg0: i32) -> (i32, i32) {
    %c0_i32 = arith.constant 0 : i32
    %c0_i32_0 = arith.constant 0 : i32
    %c0_i32_1 = arith.constant 0 : i32
    return %c0_i32, %c0_i32_0 : i32, i32
  }
  func.func @transform_6(%arg0: i32) -> (i32, i32) {
    %c0_i32 = arith.constant 0 : i32
    %c0_i32_0 = arith.constant 0 : i32
    %c0_i32_1 = arith.constant 0 : i32
    return %c0_i32, %c0_i32_0 : i32, i32
  }
  func.func @transform_7(%arg0: i32) -> (i32, i32, i32, i32) {
    %c0_i32 = arith.constant 0 : i32
    %c0_i32_0 = arith.constant 0 : i32
    %c0_i32_1 = arith.constant 0 : i32
    %c0_i32_2 = arith.constant 0 : i32
    return %arg0, %c0_i32, %c0_i32_0, %c0_i32_1 : i32, i32, i32, i32
  }
}

</mosaic_0001>

<llo_original>
// kernel: tpu_custom_call.1
$region0: #{tpu_custom_call.1}
  #allocation0 [shape = 'u32[]', space=smem, size = 0x4, offset = 0x4, fixed_abs, tag = 'smem constant byte address 0x4 - core index']
  #allocation1 [shape = 'u32[72,128]{1,0:T(1,128)}', space=vmem, size = 0x9000, scoped, tag = 'internal scratch']
  #allocation2 [shape = 'f32[10,10,128]{2,1,0:T(8,128)}', space=vmem, size = 0x14000, scoped, tag = 'scratch operand']
  #allocation3 [shape = 'f32[10,10,128]{2,1,0:T(8,128)}', space=vmem, size = 0x14000, scoped, tag = 'scratch operand']
  %s0 = inlined_call_operand.hbm [shape: f32[2,8,2,8,256], index: 0, kind: input, shape index: {}]
  %s1 = inlined_call_operand.hbm [shape: bf16[1152,128], index: 1, kind: input, shape index: {}]
  %s2 = inlined_call_operand.vmem [shape: f32[1,128], index: 2, kind: input, shape index: {}]
  %s3 = inlined_call_operand.vmem [shape: f32[1,128], index: 3, kind: input, shape index: {}]
  %s4 = inlined_call_operand.hbm [shape: bf16[1152,128], index: 4, kind: input, shape index: {}]
  %s5 = inlined_call_operand.vmem [shape: f32[1,128], index: 5, kind: input, shape index: {}]
  %s6 = inlined_call_operand.vmem [shape: f32[1,128], index: 6, kind: input, shape index: {}]
  %s7 = inlined_call_operand.hbm [shape: f32[2,8,8,128], index: 7, kind: output, shape index: {}]
  %s8 = sld [smem:[#allocation0]]
  $region73: #{tpu_custom_call.1} parent=0
    _
  %s10 = ssub.s32 1, %s8
  %s11 = scalar_select 0, %s10, %s8
  $region1: #{tpu_custom_call.1} parent=0
    #allocation4 [shape = 'u8[262144]{0}', space=vmem, size = 0x40000, scoped, tag = 'input window, operand 0']
    #allocation5 [shape = 's32[2]{0}', space=sflag, size = 0x8, scoped, tag = 'scoped memory for tpu_custom_call.1']
    #allocation6 [shape = 's32[2]{0}', space=sflag, size = 0x8, scoped, tag = 'scoped memory for tpu_custom_call.1']
    #allocation7 [shape = 'u8[294912]{0}', space=vmem, size = 0x48000, scoped, tag = 'input window, operand 1, single buffered']
    #allocation8 [shape = 's32[1]{0}', space=sflag, size = 0x4, scoped, tag = 'scoped memory for tpu_custom_call.1']
    #allocation9 [shape = 'u8[294912]{0}', space=vmem, size = 0x48000, scoped, tag = 'input window, operand 4, single buffered']
    #allocation10 [shape = 'u8[65536]{0}', space=vmem, size = 0x10000, scoped, tag = 'output window, operand 0']
    %12 = vsyncpa [#allocation5], 0
    %s13 = scalar_lea.sflag [#allocation5], 1
    %14 = vsyncpa %s13, 0
    %15 = vsyncpa [#allocation8], 0
    %16 = vsyncpa [#allocation6], 0
    %s17 = scalar_lea.sflag [#allocation6], 1
    %18 = vsyncpa %s17, 0
    loop: start=0, step=1, limit=4
    $region2: #{tpu_custom_call.1} parent=1 // loop_pre_header
      _
    $region3: #{tpu_custom_call.1} parent=1 // loop_header
      %s20 = sphi 0, %s24
      %p21 = scmp.ge.s32.totalorder %s20, 4
      %s30 = sphi 0, %s32
      %s33 = sphi 0, %s30
      %s34 = sphi 0, %s33
      %s50 = sphi 0, %s34
      %s54 = sphi 0, %s54
      %s56 = sphi 0, %s54
      %s57 = sphi 0, %s56
      %s71 = sphi 0, %s57
      %s75 = sphi 0, %s75
      %s77 = sphi 0, %s75
      %s78 = sphi 0, %s77
      %s92 = sphi 0, %s78
      %s96 = sphi 0, %s96
      %s98 = sphi 0, %s96
      %s99 = sphi 0, %s98
      %s113 = sphi 0, %s99
      %s117 = sphi 0, %s117
      %s119 = sphi 0, %s117
      %s120 = sphi 0, %s119
      %s134 = sphi 0, %s120
      %s138 = sphi 0, %s138
      %s140 = sphi 0, %s138
      %s141 = sphi 0, %s140
      %s155 = sphi 0, %s141
      %s159 = sphi 0, %s159
      %s161 = sphi 0, %s159
      %s162 = sphi 0, %s161
      %s176 = sphi 0, %s162
      %s182 = sphi 0, %s184
      %s185 = sphi 0, %s182
      %s186 = sphi 0, %s185
      %s202 = sphi 0, %s186
    $region4: #{tpu_custom_call.1} parent=1 // loop_header_branch
      %23 = sbr.rel (%p21) target = $region8
    $region5: #{tpu_custom_call.1} parent=1 // loop_body
      %s25 = ssub.s32 %s20, 1
      %s26 = ssub.s32 %s20, 2
      %s27 = sadd.s32 %s20, 1
      %s28 = ssub.s32 %s20, %s27
      %p29 = scmp.eq.s32.totalorder %s28, 0
      %s31 = sadd.s32 %s30, 1
      %s32 = scalar_select %p29, %s30, %s31
      %p35 = pneg %p29
      %p36 = scmp.eq.s32.totalorder %s20, 1
      %p37 = por %p35, %p36
      %p38 = scmp.ne.s32.totalorder %s30, %s33
      %p39 = scmp.eq.s32.totalorder %s20, 0
      %p40 = por %p38, %p39
      %p41 = scmp.ne.s32.totalorder %s30, %s33
      %p42 = scmp.eq.s32.totalorder %s25, 1
      %p43 = por %p41, %p42
      %p44 = scmp.ne.s32.totalorder %s33, %s34
      %p45 = scmp.eq.s32.totalorder %s25, 0
      %p46 = por %p44, %p45
      %p47 = scmp.ne.s32.totalorder %s33, %s34
      %p48 = scmp.eq.s32.totalorder %s26, 1
      %p49 = por %p47, %p48
      %p51 = scmp.ne.s32.totalorder %s34, %s50
      %p52 = scmp.eq.s32.totalorder %s26, 0
      %p53 = por %p51, %p52
      %s55 = sadd.s32 %s54, 1
      %p58 = scmp.eq.s32.totalorder %s20, 1
      %p59 = scmp.ne.s32.totalorder %s54, %s56
      %p60 = scmp.eq.s32.totalorder %s20, 0
      %p61 = por %p59, %p60
      %p62 = scmp.ne.s32.totalorder %s54, %s56
      %p63 = scmp.eq.s32.totalorder %s25, 1
      %p64 = por %p62, %p63
      %p65 = scmp.ne.s32.totalorder %s56, %s57
      %p66 = scmp.eq.s32.totalorder %s25, 0
      %p67 = por %p65, %p66
      %p68 = scmp.ne.s32.totalorder %s56, %s57
      %p69 = scmp.eq.s32.totalorder %s26, 1
      %p70 = por %p68, %p69
      %p72 = scmp.ne.s32.totalorder %s57, %s71
      %p73 = scmp.eq.s32.totalorder %s26, 0
      %p74 = por %p72, %p73
      %s76 = sadd.s32 %s75, 1
      %p79 = scmp.eq.s32.totalorder %s20, 1
      %p80 = scmp.ne.s32.totalorder %s75, %s77
      %p81 = scmp.eq.s32.totalorder %s20, 0
      %p82 = por %p80, %p81
      %p83 = scmp.ne.s32.totalorder %s75, %s77
      %p84 = scmp.eq.s32.totalorder %s25, 1
      %p85 = por %p83, %p84
      %p86 = scmp.ne.s32.totalorder %s77, %s78
      %p87 = scmp.eq.s32.totalorder %s25, 0
      %p88 = por %p86, %p87
      %p89 = scmp.ne.s32.totalorder %s77, %s78
      %p90 = scmp.eq.s32.totalorder %s26, 1
      %p91 = por %p89, %p90
      %p93 = scmp.ne.s32.totalorder %s78, %s92
      %p94 = scmp.eq.s32.totalorder %s26, 0
      %p95 = por %p93, %p94
      %s97 = sadd.s32 %s96, 1
      %p100 = scmp.eq.s32.totalorder %s20, 1
      %p101 = scmp.ne.s32.totalorder %s96, %s98
      %p102 = scmp.eq.s32.totalorder %s20, 0
      %p103 = por %p101, %p102
      %p104 = scmp.ne.s32.totalorder %s96, %s98
      %p105 = scmp.eq.s32.totalorder %s25, 1
      %p106 = por %p104, %p105
      %p107 = scmp.ne.s32.totalorder %s98, %s99
      %p108 = scmp.eq.s32.totalorder %s25, 0
      %p109 = por %p107, %p108
      %p110 = scmp.ne.s32.totalorder %s98, %s99
      %p111 = scmp.eq.s32.totalorder %s26, 1
      %p112 = por %p110, %p111
      %p114 = scmp.ne.s32.totalorder %s99, %s113
      %p115 = scmp.eq.s32.totalorder %s26, 0
      %p116 = por %p114, %p115
      %s118 = sadd.s32 %s117, 1
      %p121 = scmp.eq.s32.totalorder %s20, 1
      %p122 = scmp.ne.s32.totalorder %s117, %s119
      %p123 = scmp.eq.s32.totalorder %s20, 0
      %p124 = por %p122, %p123
      %p125 = scmp.ne.s32.totalorder %s117, %s119
      %p126 = scmp.eq.s32.totalorder %s25, 1
      %p127 = por %p125, %p126
      %p128 = scmp.ne.s32.totalorder %s119, %s120
      %p129 = scmp.eq.s32.totalorder %s25, 0
      %p130 = por %p128, %p129
      %p131 = scmp.ne.s32.totalorder %s119, %s120
      %p132 = scmp.eq.s32.totalorder %s26, 1
      %p133 = por %p131, %p132
      %p135 = scmp.ne.s32.totalorder %s120, %s134
      %p136 = scmp.eq.s32.totalorder %s26, 0
      %p137 = por %p135, %p136
      %s139 = sadd.s32 %s138, 1
      %p142 = scmp.eq.s32.totalorder %s20, 1
      %p143 = scmp.ne.s32.totalorder %s138, %s140
      %p144 = scmp.eq.s32.totalorder %s20, 0
      %p145 = por %p143, %p144
      %p146 = scmp.ne.s32.totalorder %s138, %s140
      %p147 = scmp.eq.s32.totalorder %s25, 1
      %p148 = por %p146, %p147
      %p149 = scmp.ne.s32.totalorder %s140, %s141
      %p150 = scmp.eq.s32.totalorder %s25, 0
      %p151 = por %p149, %p150
      %p152 = scmp.ne.s32.totalorder %s140, %s141
      %p153 = scmp.eq.s32.totalorder %s26, 1
      %p154 = por %p152, %p153
      %p156 = scmp.ne.s32.totalorder %s141, %s155
      %p157 = scmp.eq.s32.totalorder %s26, 0
      %p158 = por %p156, %p157
      %s160 = sadd.s32 %s159, 1
      %p163 = scmp.eq.s32.totalorder %s20, 1
      %p164 = scmp.ne.s32.totalorder %s159, %s161
      %p165 = scmp.eq.s32.totalorder %s20, 0
      %p166 = por %p164, %p165
      %p167 = scmp.ne.s32.totalorder %s159, %s161
      %p168 = scmp.eq.s32.totalorder %s25, 1
      %p169 = por %p167, %p168
      %p170 = scmp.ne.s32.totalorder %s161, %s162
      %p171 = scmp.eq.s32.totalorder %s25, 0
      %p172 = por %p170, %p171
      %p173 = scmp.ne.s32.totalorder %s161, %s162
      %p174 = scmp.eq.s32.totalorder %s26, 1
      %p175 = por %p173, %p174
      %p177 = scmp.ne.s32.totalorder %s162, %s176
      %p178 = scmp.eq.s32.totalorder %s26, 0
      %p179 = por %p177, %p178
      %s180 = ssub.s32 %s20, %s27
      %p181 = scmp.eq.s32.totalorder %s180, 0
      %s183 = sadd.s32 %s182, 1
      %s184 = scalar_select %p181, %s182, %s183
      %p187 = pneg %p181
      %p188 = scmp.eq.s32.totalorder %s20, 1
      %p189 = por %p187, %p188
      %p190 = scmp.ne.s32.totalorder %s182, %s185
      %p191 = scmp.eq.s32.totalorder %s20, 0
      %p192 = por %p190, %p191
      %p193 = scmp.ne.s32.totalorder %s182, %s185
      %p194 = scmp.eq.s32.totalorder %s25, 1
      %p195 = por %p193, %p194
      %p196 = scmp.ne.s32.totalorder %s185, %s186
      %p197 = scmp.eq.s32.totalorder %s25, 0
      %p198 = por %p196, %p197
      %p199 = scmp.ne.s32.totalorder %s185, %s186
      %p200 = scmp.eq.s32.totalorder %s26, 1
      %p201 = por %p199, %p200
      %p203 = scmp.ne.s32.totalorder %s186, %s202
      %p204 = scmp.eq.s32.totalorder %s26, 0
      %p205 = por %p203, %p204
      %p206 = scmp.le.s32.totalorder 1, %s20
      %p207 = scmp.lt.s32.totalorder %s20, 3
      %p208 = pnand %p206, %p207
      %p209 = pneg %p208
      // Predicated region
      $region9: #{tpu_custom_call.1} parent=5 // pred_check
        _
      $region10: #{tpu_custom_call.1} parent=5 // pred_check_branch
        %211 = sbr.rel (%p208) target = $region12
      $region11: #{tpu_custom_call.1} parent=5 // pred_region
        %s212 = ssub.s32 %s20, 1
        // Predicated region
        $region13: #{tpu_custom_call.1} parent=11 // pred_check
          %p213 = pneg %p67
        $region14: #{tpu_custom_call.1} parent=11 // pred_check_branch
          %215 = sbr.rel (%p213) target = $region16
        $region15: #{tpu_custom_call.1} parent=11 // pred_region
          %217 = vsyncadd [#allocation8], 0
          %s218 = sshll.u32 %s1, 4
          %s219 = int_to_ptr.hbm [resolvable:$true] %s218
          %s220 = sshll.u32 [#allocation7], 4
          %s221 = int_to_ptr.vmem [resolvable:$true] %s220
          %226 = dma.hbm_to_vmem [thread:$0]  %s219, 9216, %s221, [#allocation8], 64, 64, 4
        $region16: #{tpu_custom_call.1} parent=11 // pred_fallthru
          _
        // Predicated region
        $region17: #{tpu_custom_call.1} parent=11 // pred_check
          %p227 = pneg %p88
        $region18: #{tpu_custom_call.1} parent=11 // pred_check_branch
          %229 = sbr.rel (%p227) target = $region20
        $region19: #{tpu_custom_call.1} parent=11 // pred_region
          _
        $region20: #{tpu_custom_call.1} parent=11 // pred_fallthru
          _
        // Predicated region
        $region21: #{tpu_custom_call.1} parent=11 // pred_check
          %p230 = pneg %p109
        $region22: #{tpu_custom_call.1} parent=11 // pred_check_branch
          %232 = sbr.rel (%p230) target = $region24
        $region23: #{tpu_custom_call.1} parent=11 // pred_region
          _
        $region24: #{tpu_custom_call.1} parent=11 // pred_fallthru
          _
        // Predicated region
        $region25: #{tpu_custom_call.1} parent=11 // pred_check
          %p233 = pneg %p130
        $region26: #{tpu_custom_call.1} parent=11 // pred_check_branch
          %235 = sbr.rel (%p233) target = $region28
        $region27: #{tpu_custom_call.1} parent=11 // pred_region
          %237 = vsyncadd [#allocation8], 0
          %s238 = sshll.u32 %s4, 4
          %s239 = int_to_ptr.hbm [resolvable:$true] %s238
          %s240 = sshll.u32 [#allocation9], 4
          %s241 = int_to_ptr.vmem [resolvable:$true] %s240
          %246 = dma.hbm_to_vmem [thread:$0]  %s239, 9216, %s241, [#allocation8], 64, 64, 4
        $region28: #{tpu_custom_call.1} parent=11 // pred_fallthru
          _
        // Predicated region
        $region29: #{tpu_custom_call.1} parent=11 // pred_check
          %p247 = pneg %p151
        $region30: #{tpu_custom_call.1} parent=11 // pred_check_branch
          %249 = sbr.rel (%p247) target = $region32
        $region31: #{tpu_custom_call.1} parent=11 // pred_region
          _
        $region32: #{tpu_custom_call.1} parent=11 // pred_fallthru
          _
        // Predicated region
        $region33: #{tpu_custom_call.1} parent=11 // pred_check
          %p250 = pneg %p172
        $region34: #{tpu_custom_call.1} parent=11 // pred_check_branch
          %252 = sbr.rel (%p250) target = $region36
        $region35: #{tpu_custom_call.1} parent=11 // pred_region
          _
        $region36: #{tpu_custom_call.1} parent=11 // pred_fallthru
          _
      $region12: #{tpu_custom_call.1} parent=5 // pred_fallthru
        _
      %p253 = scmp.lt.s32.totalorder %s20, 2
      // Predicated region
      $region37: #{tpu_custom_call.1} parent=5 // pred_check
        %p254 = pneg %p253
      $region38: #{tpu_custom_call.1} parent=5 // pred_check_branch
        %256 = sbr.rel (%p254) target = $region40
      $region39: #{tpu_custom_call.1} parent=5 // pred_region
        // Predicated region
        $region41: #{tpu_custom_call.1} parent=39 // pred_check
          %p257 = pneg %p40
        $region42: #{tpu_custom_call.1} parent=39 // pred_check_branch
          %259 = sbr.rel (%p257) target = $region44
        $region43: #{tpu_custom_call.1} parent=39 // pred_region
          %s260 = sand.u32 %s30, 1
          %s261 = scalar_lea.sflag [#allocation5], %s260
          %s262 = sand.u32 %s30, 1
          %s263 = smul.addr %s262, 256
          %s264 = scalar_lea.vmem [#allocation4], %s263
          %266 = vsyncadd %s261, 0
          %s267 = smul.addr %s20, 32
          %s268 = smul.addr %s267, 8
          %s269 = scalar_lea.hbm %s0, %s268
          %s270 = sshll.u32 %s269, 4
          %s271 = int_to_ptr.hbm [resolvable:$true] %s270
          %s272 = sshll.u32 %s264, 4
          %s273 = int_to_ptr.vmem [resolvable:$true] %s272
          %278 = dma.hbm_to_vmem [thread:$0]  %s271, 4096, %s273, %s261, 256, 256, 16
        $region44: #{tpu_custom_call.1} parent=39 // pred_fallthru
          _
      $region40: #{tpu_custom_call.1} parent=5 // pred_fallthru
        _
      %p279 = scmp.le.s32.totalorder 1, %s20
      %p280 = scmp.lt.s32.totalorder %s20, 3
      %p281 = pnand %p279, %p280
      %p282 = pneg %p281
      // Predicated region
      $region45: #{tpu_custom_call.1} parent=5 // pred_check
        _
      $region46: #{tpu_custom_call.1} parent=5 // pred_check_branch
        %284 = sbr.rel (%p281) target = $region48
      $region47: #{tpu_custom_call.1} parent=5 // pred_region
        %s285 = ssub.s32 %s20, 1
        %s286 = sand.u32 %s33, 1
        %s287 = scalar_lea.sflag [#allocation5], %s286
        %s288 = sand.u32 %s33, 1
        %s289 = smul.addr %s288, 256
        %s290 = scalar_lea.vmem [#allocation4], %s289
        // Predicated region
        $region49: #{tpu_custom_call.1} parent=47 // pred_check
          %p291 = pneg %p46
        $region50: #{tpu_custom_call.1} parent=47 // pred_check_branch
          %293 = sbr.rel (%p291) target = $region52
        $region51: #{tpu_custom_call.1} parent=47 // pred_region
          %295 = dma.done %s287, 4096
        $region52: #{tpu_custom_call.1} parent=47 // pred_fallthru
          _
        // Predicated region
        $region53: #{tpu_custom_call.1} parent=47 // pred_check
          %p296 = pneg %p67
        $region54: #{tpu_custom_call.1} parent=47 // pred_check_branch
          %298 = sbr.rel (%p296) target = $region56
        $region55: #{tpu_custom_call.1} parent=47 // pred_region
          %300 = dma.done [#allocation8], 9216
        $region56: #{tpu_custom_call.1} parent=47 // pred_fallthru
          _
        // Predicated region
        $region57: #{tpu_custom_call.1} parent=47 // pred_check
          %p301 = pneg %p130
        $region58: #{tpu_custom_call.1} parent=47 // pred_check_branch
          %303 = sbr.rel (%p301) target = $region60
        $region59: #{tpu_custom_call.1} parent=47 // pred_region
          %305 = dma.done [#allocation8], 9216
        $region60: #{tpu_custom_call.1} parent=47 // pred_fallthru
          _
        %s306 = sand.u32 %s33, 1
        %s307 = scalar_lea.sflag [#allocation5], %s306
        %s308 = sand.u32 %s33, 1
        %s309 = smul.addr %s308, 256
        %s310 = scalar_lea.vmem [#allocation4], %s309
        %p311 = pneg %p46
        %p312 = pneg %p43
        %p313 = pneg %p67
        %p314 = pneg %p64
        %p315 = pneg %p88
        %p316 = pneg %p85
        %p317 = pneg %p109
        %p318 = pneg %p106
        %p319 = pneg %p130
        %p320 = pneg %p127
        %p321 = pneg %p151
        %p322 = pneg %p148
        %p323 = pneg %p172
        %p324 = pneg %p169
        %p325 = pneg %p198
        %p326 = pneg %p195
        %s327 = sand.u32 %s185, 1
        %s328 = scalar_lea.sflag [#allocation6], %s327
        %s329 = sand.u32 %s185, 1
        %s330 = smul.addr %s329, 64
        %s331 = scalar_lea.vmem [#allocation10], %s330
        %v332 = vld [vmem:[%s290] sm:$0xff]
        %v333 = vld [vmem:[%s290 + $0x20] sm:$0xff]
        %v334 = vld [vmem:[%s290 + $0x40] sm:$0xff]
        %v335 = vld [vmem:[%s290 + $0x60] sm:$0xff]
        %v336 = vld [vmem:[%s290 + $0x80] sm:$0xff]
        %v337 = vld [vmem:[%s290 + $0xa0] sm:$0xff]
        %v338 = vld [vmem:[%s290 + $0xc0] sm:$0xff]
        %v339 = vld [vmem:[%s290 + $0xe0] sm:$0xff]
        %v340 = vld [vmem:[%s290 + $0x8] sm:$0xff]
        %v341 = vld [vmem:[%s290 + $0x28] sm:$0xff]
        %v342 = vld [vmem:[%s290 + $0x48] sm:$0xff]
        %v343 = vld [vmem:[%s290 + $0x68] sm:$0xff]
        %v344 = vld [vmem:[%s290 + $0x88] sm:$0xff]
        %v345 = vld [vmem:[%s290 + $0xa8] sm:$0xff]
        %v346 = vld [vmem:[%s290 + $0xc8] sm:$0xff]
        %v347 = vld [vmem:[%s290 + $0xe8] sm:$0xff]
        %s348 = scalar_lea.vmem %s290, 16 [#allocation4]
        %v349 = vld [vmem:[%s348] sm:$0xff]
        %v350 = vld [vmem:[%s348 + $0x20] sm:$0xff]
        %v351 = vld [vmem:[%s348 + $0x40] sm:$0xff]
        %v352 = vld [vmem:[%s348 + $0x60] sm:$0xff]
        %v353 = vld [vmem:[%s348 + $0x80] sm:$0xff]
        %v354 = vld [vmem:[%s348 + $0xa0] sm:$0xff]
        %v355 = vld [vmem:[%s348 + $0xc0] sm:$0xff]
        %v356 = vld [vmem:[%s348 + $0xe0] sm:$0xff]
        %v357 = vld [vmem:[%s348 + $0x8] sm:$0xff]
        %v358 = vld [vmem:[%s348 + $0x28] sm:$0xff]
        %v359 = vld [vmem:[%s348 + $0x48] sm:$0xff]
        %v360 = vld [vmem:[%s348 + $0x68] sm:$0xff]
        %v361 = vld [vmem:[%s348 + $0x88] sm:$0xff]
        %v362 = vld [vmem:[%s348 + $0xa8] sm:$0xff]
        %v363 = vld [vmem:[%s348 + $0xc8] sm:$0xff]
        %v364 = vld [vmem:[%s348 + $0xe8] sm:$0xff]
        %v365 = vmax.f32 %v332, %v340
        %v366 = vmax.f32 %v333, %v341
        %v367 = vmax.f32 %v334, %v342
        %v368 = vmax.f32 %v335, %v343
        %v369 = vmax.f32 %v336, %v344
        %v370 = vmax.f32 %v337, %v345
        %v371 = vmax.f32 %v338, %v346
        %v372 = vmax.f32 %v339, %v347
        %v373 = vmax.f32 %v349, %v357
        %v374 = vmax.f32 %v350, %v358
        %v375 = vmax.f32 %v351, %v359
        %v376 = vmax.f32 %v352, %v360
        %v377 = vmax.f32 %v353, %v361
        %v378 = vmax.f32 %v354, %v362
        %v379 = vmax.f32 %v355, %v363
        %v380 = vmax.f32 %v356, %v364
        %v381 = vmax.f32 %v365, %v373
        %v382 = vmax.f32 %v366, %v374
        %v383 = vmax.f32 %v367, %v375
        %v384 = vmax.f32 %v368, %v376
        %v385 = vmax.f32 %v369, %v377
        %v386 = vmax.f32 %v370, %v378
        %v387 = vmax.f32 %v371, %v379
        %v388 = vmax.f32 %v372, %v380
        %389 = vst [vmem:[#allocation2] sm:$0xff] 0.0
        %390 = vst [vmem:[#allocation2 + $0x8] sm:$0x3] 0.0
        %s391 = scalar_lea.vmem [#allocation2], 144
        %392 = vst [vmem:[%s391] sm:$0xff] 0.0
        %393 = vst [vmem:[%s391 + $0x8] sm:$0x3] 0.0
        %s394 = scalar_lea.vmem [#allocation2], 16
        %395 = vst [vmem:[%s394] sm:$0x1] 0.0
        %396 = vst [vmem:[%s394 + $0x10] sm:$0x1] 0.0
        %397 = vst [vmem:[%s394 + $0x20] sm:$0x1] 0.0
        %398 = vst [vmem:[%s394 + $0x30] sm:$0x1] 0.0
        %399 = vst [vmem:[%s394 + $0x40] sm:$0x1] 0.0
        %400 = vst [vmem:[%s394 + $0x50] sm:$0x1] 0.0
        %401 = vst [vmem:[%s394 + $0x60] sm:$0x1] 0.0
        %402 = vst [vmem:[%s394 + $0x70] sm:$0x1] 0.0
        %403 = vst [vmem:[%s394 + $0x9] sm:$0x1] 0.0
        %404 = vst [vmem:[%s394 + $0x19] sm:$0x1] 0.0
        %405 = vst [vmem:[%s394 + $0x29] sm:$0x1] 0.0
        %406 = vst [vmem:[%s394 + $0x39] sm:$0x1] 0.0
        %407 = vst [vmem:[%s394 + $0x49] sm:$0x1] 0.0
        %408 = vst [vmem:[%s394 + $0x59] sm:$0x1] 0.0
        %409 = vst [vmem:[%s394 + $0x69] sm:$0x1] 0.0
        %410 = vst [vmem:[%s394 + $0x79] sm:$0x1] 0.0
        %411 = vst [vmem:[%s394 + $0x1] sm:$0xff] %v381
        %412 = vst [vmem:[%s394 + $0x11] sm:$0xff] %v382
        %413 = vst [vmem:[%s394 + $0x21] sm:$0xff] %v383
        %414 = vst [vmem:[%s394 + $0x31] sm:$0xff] %v384
        %415 = vst [vmem:[%s394 + $0x41] sm:$0xff] %v385
        %416 = vst [vmem:[%s394 + $0x51] sm:$0xff] %v386
        %417 = vst [vmem:[%s394 + $0x61] sm:$0xff] %v387
        %418 = vst [vmem:[%s394 + $0x71] sm:$0xff] %v388
        %v419 = vld [vmem:[#allocation2] sm:$0xff]
        %v420 = vld [vmem:[#allocation2 + $0x10] sm:$0xff]
        %v421 = vld [vmem:[#allocation2 + $0x20] sm:$0xff]
        %v422 = vld [vmem:[#allocation2 + $0x30] sm:$0xff]
        %v423 = vld [vmem:[#allocation2 + $0x40] sm:$0xff]
        %v424 = vld [vmem:[#allocation2 + $0x50] sm:$0xff]
        %v425 = vld [vmem:[#allocation2 + $0x60] sm:$0xff]
        %v426 = vld [vmem:[#allocation2 + $0x70] sm:$0xff]
        %v427 = vpack.c.bf16 %v419, %v419
        %v428 = vpack.c.bf16 %v420, %v420
        %v429 = vpack.c.bf16 %v421, %v421
        %v430 = vpack.c.bf16 %v422, %v422
        %v431 = vpack.c.bf16 %v423, %v423
        %v432 = vpack.c.bf16 %v424, %v424
        %v433 = vpack.c.bf16 %v425, %v425
        %v434 = vpack.c.bf16 %v426, %v426
        %v435 = vld [vmem:[#allocation2 + $0x1] sm:$0xff]
        %v436 = vld [vmem:[#allocation2 + $0x11] sm:$0xff]
        %v437 = vld [vmem:[#allocation2 + $0x21] sm:$0xff]
        %v438 = vld [vmem:[#allocation2 + $0x31] sm:$0xff]
        %v439 = vld [vmem:[#allocation2 + $0x41] sm:$0xff]
        %v440 = vld [vmem:[#allocation2 + $0x51] sm:$0xff]
        %v441 = vld [vmem:[#allocation2 + $0x61] sm:$0xff]
        %v442 = vld [vmem:[#allocation2 + $0x71] sm:$0xff]
        %v443 = vpack.c.bf16 %v435, %v435
        %v444 = vpack.c.bf16 %v436, %v436
        %v445 = vpack.c.bf16 %v437, %v437
        %v446 = vpack.c.bf16 %v438, %v438
        %v447 = vpack.c.bf16 %v439, %v439
        %v448 = vpack.c.bf16 %v440, %v440
        %v449 = vpack.c.bf16 %v441, %v441
        %v450 = vpack.c.bf16 %v442, %v442
        %v451 = vld [vmem:[#allocation2 + $0x2] sm:$0xff]
        %v452 = vld [vmem:[#allocation2 + $0x12] sm:$0xff]
        %v453 = vld [vmem:[#allocation2 + $0x22] sm:$0xff]
        %v454 = vld [vmem:[#allocation2 + $0x32] sm:$0xff]
        %v455 = vld [vmem:[#allocation2 + $0x42] sm:$0xff]
        %v456 = vld [vmem:[#allocation2 + $0x52] sm:$0xff]
        %v457 = vld [vmem:[#allocation2 + $0x62] sm:$0xff]
        %v458 = vld [vmem:[#allocation2 + $0x72] sm:$0xff]
        %v459 = vpack.c.bf16 %v451, %v451
        %v460 = vpack.c.bf16 %v452, %v452
        %v461 = vpack.c.bf16 %v453, %v453
        %v462 = vpack.c.bf16 %v454, %v454
        %v463 = vpack.c.bf16 %v455, %v455
        %v464 = vpack.c.bf16 %v456, %v456
        %v465 = vpack.c.bf16 %v457, %v457
        %v466 = vpack.c.bf16 %v458, %v458
        %v467 = vld [vmem:[%s394] sm:$0xff]
        %v468 = vld [vmem:[%s394 + $0x10] sm:$0xff]
        %v469 = vld [vmem:[%s394 + $0x20] sm:$0xff]
        %v470 = vld [vmem:[%s394 + $0x30] sm:$0xff]
        %v471 = vld [vmem:[%s394 + $0x40] sm:$0xff]
        %v472 = vld [vmem:[%s394 + $0x50] sm:$0xff]
        %v473 = vld [vmem:[%s394 + $0x60] sm:$0xff]
        %v474 = vld [vmem:[%s394 + $0x70] sm:$0xff]
        %v475 = vpack.c.bf16 %v467, %v467
        %v476 = vpack.c.bf16 %v468, %v468
        %v477 = vpack.c.bf16 %v469, %v469
        %v478 = vpack.c.bf16 %v470, %v470
        %v479 = vpack.c.bf16 %v471, %v471
        %v480 = vpack.c.bf16 %v472, %v472
        %v481 = vpack.c.bf16 %v473, %v473
        %v482 = vpack.c.bf16 %v474, %v474
        %v483 = vld [vmem:[%s394 + $0x1] sm:$0xff]
        %v484 = vld [vmem:[%s394 + $0x11] sm:$0xff]
        %v485 = vld [vmem:[%s394 + $0x21] sm:$0xff]
        %v486 = vld [vmem:[%s394 + $0x31] sm:$0xff]
        %v487 = vld [vmem:[%s394 + $0x41] sm:$0xff]
        %v488 = vld [vmem:[%s394 + $0x51] sm:$0xff]
        %v489 = vld [vmem:[%s394 + $0x61] sm:$0xff]
        %v490 = vld [vmem:[%s394 + $0x71] sm:$0xff]
        %v491 = vpack.c.bf16 %v483, %v483
        %v492 = vpack.c.bf16 %v484, %v484
        %v493 = vpack.c.bf16 %v485, %v485
        %v494 = vpack.c.bf16 %v486, %v486
        %v495 = vpack.c.bf16 %v487, %v487
        %v496 = vpack.c.bf16 %v488, %v488
        %v497 = vpack.c.bf16 %v489, %v489
        %v498 = vpack.c.bf16 %v490, %v490
        %v499 = vld [vmem:[%s394 + $0x2] sm:$0xff]
        %v500 = vld [vmem:[%s394 + $0x12] sm:$0xff]
        %v501 = vld [vmem:[%s394 + $0x22] sm:$0xff]
        %v502 = vld [vmem:[%s394 + $0x32] sm:$0xff]
        %v503 = vld [vmem:[%s394 + $0x42] sm:$0xff]
        %v504 = vld [vmem:[%s394 + $0x52] sm:$0xff]
        %v505 = vld [vmem:[%s394 + $0x62] sm:$0xff]
        %v506 = vld [vmem:[%s394 + $0x72] sm:$0xff]
        %v507 = vpack.c.bf16 %v499, %v499
        %v508 = vpack.c.bf16 %v500, %v500
        %v509 = vpack.c.bf16 %v501, %v501
        %v510 = vpack.c.bf16 %v502, %v502
        %v511 = vpack.c.bf16 %v503, %v503
        %v512 = vpack.c.bf16 %v504, %v504
        %v513 = vpack.c.bf16 %v505, %v505
        %v514 = vpack.c.bf16 %v506, %v506
        %s515 = scalar_lea.vmem [#allocation2], 32
        %v516 = vld [vmem:[%s515] sm:$0xff]
        %v517 = vld [vmem:[%s515 + $0x10] sm:$0xff]
        %v518 = vld [vmem:[%s515 + $0x20] sm:$0xff]
        %v519 = vld [vmem:[%s515 + $0x30] sm:$0xff]
        %v520 = vld [vmem:[%s515 + $0x40] sm:$0xff]
        %v521 = vld [vmem:[%s515 + $0x50] sm:$0xff]
        %v522 = vld [vmem:[%s515 + $0x60] sm:$0xff]
        %v523 = vld [vmem:[%s515 + $0x70] sm:$0xff]
        %v524 = vpack.c.bf16 %v516, %v516
        %v525 = vpack.c.bf16 %v517, %v517
        %v526 = vpack.c.bf16 %v518, %v518
        %v527 = vpack.c.bf16 %v519, %v519
        %v528 = vpack.c.bf16 %v520, %v520
        %v529 = vpack.c.bf16 %v521, %v521
        %v530 = vpack.c.bf16 %v522, %v522
        %v531 = vpack.c.bf16 %v523, %v523
        %v532 = vld [vmem:[%s515 + $0x1] sm:$0xff]
        %v533 = vld [vmem:[%s515 + $0x11] sm:$0xff]
        %v534 = vld [vmem:[%s515 + $0x21] sm:$0xff]
        %v535 = vld [vmem:[%s515 + $0x31] sm:$0xff]
        %v536 = vld [vmem:[%s515 + $0x41] sm:$0xff]
        %v537 = vld [vmem:[%s515 + $0x51] sm:$0xff]
        %v538 = vld [vmem:[%s515 + $0x61] sm:$0xff]
        %v539 = vld [vmem:[%s515 + $0x71] sm:$0xff]
        %v540 = vpack.c.bf16 %v532, %v532
        %v541 = vpack.c.bf16 %v533, %v533
        %v542 = vpack.c.bf16 %v534, %v534
        %v543 = vpack.c.bf16 %v535, %v535
        %v544 = vpack.c.bf16 %v536, %v536
        %v545 = vpack.c.bf16 %v537, %v537
        %v546 = vpack.c.bf16 %v538, %v538
        %v547 = vpack.c.bf16 %v539, %v539
        %v548 = vld [vmem:[%s515 + $0x2] sm:$0xff]
        %v549 = vld [vmem:[%s515 + $0x12] sm:$0xff]
        %v550 = vld [vmem:[%s515 + $0x22] sm:$0xff]
        %v551 = vld [vmem:[%s515 + $0x32] sm:$0xff]
        %v552 = vld [vmem:[%s515 + $0x42] sm:$0xff]
        %v553 = vld [vmem:[%s515 + $0x52] sm:$0xff]
        %v554 = vld [vmem:[%s515 + $0x62] sm:$0xff]
        %v555 = vld [vmem:[%s515 + $0x72] sm:$0xff]
        %v556 = vpack.c.bf16 %v548, %v548
        %v557 = vpack.c.bf16 %v549, %v549
        %v558 = vpack.c.bf16 %v550, %v550
        %v559 = vpack.c.bf16 %v551, %v551
        %v560 = vpack.c.bf16 %v552, %v552
        %v561 = vpack.c.bf16 %v553, %v553
        %v562 = vpack.c.bf16 %v554, %v554
        %v563 = vpack.c.bf16 %v555, %v555
        %v572 = vunpack.c.l.b16 %v427
        %v573 = vunpack.c.l.b16 %v428
        %v574 = vunpack.c.l.b16 %v429
        %v575 = vunpack.c.l.b16 %v430
        %v576 = vunpack.c.l.b16 %v431
        %v577 = vunpack.c.l.b16 %v432
        %v578 = vunpack.c.l.b16 %v433
        %v579 = vunpack.c.l.b16 %v434
        %v580 = vpack.c.b16 %v573, %v572
        %v581 = vpack.c.b16 %v575, %v574
        %v582 = vpack.c.b16 %v577, %v576
        %v583 = vpack.c.b16 %v579, %v578
        %v596 = vunpack.c.l.b16 %v443
        %v597 = vunpack.c.l.b16 %v444
        %v598 = vunpack.c.l.b16 %v445
        %v599 = vunpack.c.l.b16 %v446
        %v600 = vunpack.c.l.b16 %v447
        %v601 = vunpack.c.l.b16 %v448
        %v602 = vunpack.c.l.b16 %v449
        %v603 = vunpack.c.l.b16 %v450
        %v604 = vpack.c.b16 %v597, %v596
        %v605 = vpack.c.b16 %v599, %v598
        %v606 = vpack.c.b16 %v601, %v600
        %v607 = vpack.c.b16 %v603, %v602
        %v620 = vunpack.c.l.b16 %v459
        %v621 = vunpack.c.l.b16 %v460
        %v622 = vunpack.c.l.b16 %v461
        %v623 = vunpack.c.l.b16 %v462
        %v624 = vunpack.c.l.b16 %v463
        %v625 = vunpack.c.l.b16 %v464
        %v626 = vunpack.c.l.b16 %v465
        %v627 = vunpack.c.l.b16 %v466
        %v628 = vpack.c.b16 %v621, %v620
        %v629 = vpack.c.b16 %v623, %v622
        %v630 = vpack.c.b16 %v625, %v624
        %v631 = vpack.c.b16 %v627, %v626
        %v644 = vunpack.c.l.b16 %v475
        %v645 = vunpack.c.l.b16 %v476
        %v646 = vunpack.c.l.b16 %v477
        %v647 = vunpack.c.l.b16 %v478
        %v648 = vunpack.c.l.b16 %v479
        %v649 = vunpack.c.l.b16 %v480
        %v650 = vunpack.c.l.b16 %v481
        %v651 = vunpack.c.l.b16 %v482
        %v652 = vpack.c.b16 %v645, %v644
        %v653 = vpack.c.b16 %v647, %v646
        %v654 = vpack.c.b16 %v649, %v648
        %v655 = vpack.c.b16 %v651, %v650
        %v668 = vunpack.c.l.b16 %v491
        %v669 = vunpack.c.l.b16 %v492
        %v670 = vunpack.c.l.b16 %v493
        %v671 = vunpack.c.l.b16 %v494
        %v672 = vunpack.c.l.b16 %v495
        %v673 = vunpack.c.l.b16 %v496
        %v674 = vunpack.c.l.b16 %v497
        %v675 = vunpack.c.l.b16 %v498
        %v676 = vpack.c.b16 %v669, %v668
        %v677 = vpack.c.b16 %v671, %v670
        %v678 = vpack.c.b16 %v673, %v672
        %v679 = vpack.c.b16 %v675, %v674
        %v692 = vunpack.c.l.b16 %v507
        %v693 = vunpack.c.l.b16 %v508
        %v694 = vunpack.c.l.b16 %v509
        %v695 = vunpack.c.l.b16 %v510
        %v696 = vunpack.c.l.b16 %v511
        %v697 = vunpack.c.l.b16 %v512
        %v698 = vunpack.c.l.b16 %v513
        %v699 = vunpack.c.l.b16 %v514
        %v700 = vpack.c.b16 %v693, %v692
        %v701 = vpack.c.b16 %v695, %v694
        %v702 = vpack.c.b16 %v697, %v696
        %v703 = vpack.c.b16 %v699, %v698
        %v716 = vunpack.c.l.b16 %v524
        %v717 = vunpack.c.l.b16 %v525
        %v718 = vunpack.c.l.b16 %v526
        %v719 = vunpack.c.l.b16 %v527
        %v720 = vunpack.c.l.b16 %v528
        %v721 = vunpack.c.l.b16 %v529
        %v722 = vunpack.c.l.b16 %v530
        %v723 = vunpack.c.l.b16 %v531
        %v724 = vpack.c.b16 %v717, %v716
        %v725 = vpack.c.b16 %v719, %v718
        %v726 = vpack.c.b16 %v721, %v720
        %v727 = vpack.c.b16 %v723, %v722
        %v740 = vunpack.c.l.b16 %v540
        %v741 = vunpack.c.l.b16 %v541
        %v742 = vunpack.c.l.b16 %v542
        %v743 = vunpack.c.l.b16 %v543
        %v744 = vunpack.c.l.b16 %v544
        %v745 = vunpack.c.l.b16 %v545
        %v746 = vunpack.c.l.b16 %v546
        %v747 = vunpack.c.l.b16 %v547
        %v748 = vpack.c.b16 %v741, %v740
        %v749 = vpack.c.b16 %v743, %v742
        %v750 = vpack.c.b16 %v745, %v744
        %v751 = vpack.c.b16 %v747, %v746
        %v764 = vunpack.c.l.b16 %v556
        %v765 = vunpack.c.l.b16 %v557
        %v766 = vunpack.c.l.b16 %v558
        %v767 = vunpack.c.l.b16 %v559
        %v768 = vunpack.c.l.b16 %v560
        %v769 = vunpack.c.l.b16 %v561
        %v770 = vunpack.c.l.b16 %v562
        %v771 = vunpack.c.l.b16 %v563
        %v772 = vpack.c.b16 %v765, %v764
        %v773 = vpack.c.b16 %v767, %v766
        %v774 = vpack.c.b16 %v769, %v768
        %v775 = vpack.c.b16 %v771, %v770
        %v780 = vld [vmem:[#allocation7] sm:$0xf]
        %v781 = vld [vmem:[#allocation7 + $0x4] sm:$0xf]
        %v782 = vld [vmem:[#allocation7 + $0x8] sm:$0xf]
        %v783 = vld [vmem:[#allocation7 + $0xc] sm:$0xf]
        %v784 = vld [vmem:[#allocation7 + $0x10] sm:$0xf]
        %v785 = vld [vmem:[#allocation7 + $0x14] sm:$0xf]
        %v786 = vld [vmem:[#allocation7 + $0x18] sm:$0xf]
        %v787 = vld [vmem:[#allocation7 + $0x1c] sm:$0xf]
        %v788 = vld [vmem:[#allocation7 + $0x20] sm:$0xf]
        %v789 = vld [vmem:[#allocation7 + $0x24] sm:$0xf]
        %v790 = vld [vmem:[#allocation7 + $0x28] sm:$0xf]
        %v791 = vld [vmem:[#allocation7 + $0x2c] sm:$0xf]
        %v792 = vld [vmem:[#allocation7 + $0x30] sm:$0xf]
        %v793 = vld [vmem:[#allocation7 + $0x34] sm:$0xf]
        %v794 = vld [vmem:[#allocation7 + $0x38] sm:$0xf]
        %v795 = vld [vmem:[#allocation7 + $0x3c] sm:$0xf]
        %v796 = vld [vmem:[#allocation7 + $0x40] sm:$0xf]
        %v797 = vld [vmem:[#allocation7 + $0x44] sm:$0xf]
        %v798 = vld [vmem:[#allocation7 + $0x48] sm:$0xf]
        %v799 = vld [vmem:[#allocation7 + $0x4c] sm:$0xf]
        %v800 = vld [vmem:[#allocation7 + $0x50] sm:$0xf]
        %v801 = vld [vmem:[#allocation7 + $0x54] sm:$0xf]
        %v802 = vld [vmem:[#allocation7 + $0x58] sm:$0xf]
        %v803 = vld [vmem:[#allocation7 + $0x5c] sm:$0xf]
        %v804 = vld [vmem:[#allocation7 + $0x60] sm:$0xf]
        %v805 = vld [vmem:[#allocation7 + $0x64] sm:$0xf]
        %v806 = vld [vmem:[#allocation7 + $0x68] sm:$0xf]
        %v807 = vld [vmem:[#allocation7 + $0x6c] sm:$0xf]
        %v808 = vld [vmem:[#allocation7 + $0x70] sm:$0xf]
        %v809 = vld [vmem:[#allocation7 + $0x74] sm:$0xf]
        %v810 = vld [vmem:[#allocation7 + $0x78] sm:$0xf]
        %v811 = vld [vmem:[#allocation7 + $0x7c] sm:$0xf]
        %v812 = vld [vmem:[#allocation7 + $0x80] sm:$0xf]
        %v813 = vld [vmem:[#allocation7 + $0x84] sm:$0xf]
        %v814 = vld [vmem:[#allocation7 + $0x88] sm:$0xf]
        %v815 = vld [vmem:[#allocation7 + $0x8c] sm:$0xf]
        %v816 = vld [vmem:[#allocation7 + $0x90] sm:$0xf]
        %v817 = vld [vmem:[#allocation7 + $0x94] sm:$0xf]
        %v818 = vld [vmem:[#allocation7 + $0x98] sm:$0xf]
        %v819 = vld [vmem:[#allocation7 + $0x9c] sm:$0xf]
        %v820 = vld [vmem:[#allocation7 + $0xa0] sm:$0xf]
        %v821 = vld [vmem:[#allocation7 + $0xa4] sm:$0xf]
        %v822 = vld [vmem:[#allocation7 + $0xa8] sm:$0xf]
        %v823 = vld [vmem:[#allocation7 + $0xac] sm:$0xf]
        %v824 = vld [vmem:[#allocation7 + $0xb0] sm:$0xf]
        %v825 = vld [vmem:[#allocation7 + $0xb4] sm:$0xf]
        %v826 = vld [vmem:[#allocation7 + $0xb8] sm:$0xf]
        %v827 = vld [vmem:[#allocation7 + $0xbc] sm:$0xf]
        %v828 = vld [vmem:[#allocation7 + $0xc0] sm:$0xf]
        %v829 = vld [vmem:[#allocation7 + $0xc4] sm:$0xf]
        %v830 = vld [vmem:[#allocation7 + $0xc8] sm:$0xf]
        %v831 = vld [vmem:[#allocation7 + $0xcc] sm:$0xf]
        %v832 = vld [vmem:[#allocation7 + $0xd0] sm:$0xf]
        %v833 = vld [vmem:[#allocation7 + $0xd4] sm:$0xf]
        %v834 = vld [vmem:[#allocation7 + $0xd8] sm:$0xf]
        %v835 = vld [vmem:[#allocation7 + $0xdc] sm:$0xf]
        %v836 = vld [vmem:[#allocation7 + $0xe0] sm:$0xf]
        %v837 = vld [vmem:[#allocation7 + $0xe4] sm:$0xf]
        %v838 = vld [vmem:[#allocation7 + $0xe8] sm:$0xf]
        %v839 = vld [vmem:[#allocation7 + $0xec] sm:$0xf]
        %v840 = vld [vmem:[#allocation7 + $0xf0] sm:$0xf]
        %v841 = vld [vmem:[#allocation7 + $0xf4] sm:$0xf]
        %v842 = vld [vmem:[#allocation7 + $0xf8] sm:$0xf]
        %v843 = vld [vmem:[#allocation7 + $0xfc] sm:$0xf]
        %v844 = vld [vmem:[#allocation7 + $0x100] sm:$0xf]
        %v845 = vld [vmem:[#allocation7 + $0x104] sm:$0xf]
        %v846 = vld [vmem:[#allocation7 + $0x108] sm:$0xf]
        %v847 = vld [vmem:[#allocation7 + $0x10c] sm:$0xf]
        %v848 = vld [vmem:[#allocation7 + $0x110] sm:$0xf]
        %v849 = vld [vmem:[#allocation7 + $0x114] sm:$0xf]
        %v850 = vld [vmem:[#allocation7 + $0x118] sm:$0xf]
        %v851 = vld [vmem:[#allocation7 + $0x11c] sm:$0xf]
        %v852 = vld [vmem:[#allocation7 + $0x120] sm:$0xf]
        %v853 = vld [vmem:[#allocation7 + $0x124] sm:$0xf]
        %v854 = vld [vmem:[#allocation7 + $0x128] sm:$0xf]
        %v855 = vld [vmem:[#allocation7 + $0x12c] sm:$0xf]
        %v856 = vld [vmem:[#allocation7 + $0x130] sm:$0xf]
        %v857 = vld [vmem:[#allocation7 + $0x134] sm:$0xf]
        %v858 = vld [vmem:[#allocation7 + $0x138] sm:$0xf]
        %v859 = vld [vmem:[#allocation7 + $0x13c] sm:$0xf]
        %v860 = vld [vmem:[#allocation7 + $0x140] sm:$0xf]
        %v861 = vld [vmem:[#allocation7 + $0x144] sm:$0xf]
        %v862 = vld [vmem:[#allocation7 + $0x148] sm:$0xf]
        %v863 = vld [vmem:[#allocation7 + $0x14c] sm:$0xf]
        %v864 = vld [vmem:[#allocation7 + $0x150] sm:$0xf]
        %v865 = vld [vmem:[#allocation7 + $0x154] sm:$0xf]
        %v866 = vld [vmem:[#allocation7 + $0x158] sm:$0xf]
        %v867 = vld [vmem:[#allocation7 + $0x15c] sm:$0xf]
        %v868 = vld [vmem:[#allocation7 + $0x160] sm:$0xf]
        %v869 = vld [vmem:[#allocation7 + $0x164] sm:$0xf]
        %v870 = vld [vmem:[#allocation7 + $0x168] sm:$0xf]
        %v871 = vld [vmem:[#allocation7 + $0x16c] sm:$0xf]
        %v872 = vld [vmem:[#allocation7 + $0x170] sm:$0xf]
        %v873 = vld [vmem:[#allocation7 + $0x174] sm:$0xf]
        %v874 = vld [vmem:[#allocation7 + $0x178] sm:$0xf]
        %v875 = vld [vmem:[#allocation7 + $0x17c] sm:$0xf]
        %v876 = vld [vmem:[#allocation7 + $0x180] sm:$0xf]
        %v877 = vld [vmem:[#allocation7 + $0x184] sm:$0xf]
        %v878 = vld [vmem:[#allocation7 + $0x188] sm:$0xf]
        %v879 = vld [vmem:[#allocation7 + $0x18c] sm:$0xf]
        %v880 = vld [vmem:[#allocation7 + $0x190] sm:$0xf]
        %v881 = vld [vmem:[#allocation7 + $0x194] sm:$0xf]
        %v882 = vld [vmem:[#allocation7 + $0x198] sm:$0xf]
        %v883 = vld [vmem:[#allocation7 + $0x19c] sm:$0xf]
        %v884 = vld [vmem:[#allocation7 + $0x1a0] sm:$0xf]
        %v885 = vld [vmem:[#allocation7 + $0x1a4] sm:$0xf]
        %v886 = vld [vmem:[#allocation7 + $0x1a8] sm:$0xf]
        %v887 = vld [vmem:[#allocation7 + $0x1ac] sm:$0xf]
        %v888 = vld [vmem:[#allocation7 + $0x1b0] sm:$0xf]
        %v889 = vld [vmem:[#allocation7 + $0x1b4] sm:$0xf]
        %v890 = vld [vmem:[#allocation7 + $0x1b8] sm:$0xf]
        %v891 = vld [vmem:[#allocation7 + $0x1bc] sm:$0xf]
        %v892 = vld [vmem:[#allocation7 + $0x1c0] sm:$0xf]
        %v893 = vld [vmem:[#allocation7 + $0x1c4] sm:$0xf]
        %v894 = vld [vmem:[#allocation7 + $0x1c8] sm:$0xf]
        %v895 = vld [vmem:[#allocation7 + $0x1cc] sm:$0xf]
        %v896 = vld [vmem:[#allocation7 + $0x1d0] sm:$0xf]
        %v897 = vld [vmem:[#allocation7 + $0x1d4] sm:$0xf]
        %v898 = vld [vmem:[#allocation7 + $0x1d8] sm:$0xf]
        %v899 = vld [vmem:[#allocation7 + $0x1dc] sm:$0xf]
        %v900 = vld [vmem:[#allocation7 + $0x1e0] sm:$0xf]
        %v901 = vld [vmem:[#allocation7 + $0x1e4] sm:$0xf]
        %v902 = vld [vmem:[#allocation7 + $0x1e8] sm:$0xf]
        %v903 = vld [vmem:[#allocation7 + $0x1ec] sm:$0xf]
        %v904 = vld [vmem:[#allocation7 + $0x1f0] sm:$0xf]
        %v905 = vld [vmem:[#allocation7 + $0x1f4] sm:$0xf]
        %v906 = vld [vmem:[#allocation7 + $0x1f8] sm:$0xf]
        %v907 = vld [vmem:[#allocation7 + $0x1fc] sm:$0xf]
        %v908 = vld [vmem:[#allocation7 + $0x200] sm:$0xf]
        %v909 = vld [vmem:[#allocation7 + $0x204] sm:$0xf]
        %v910 = vld [vmem:[#allocation7 + $0x208] sm:$0xf]
        %v911 = vld [vmem:[#allocation7 + $0x20c] sm:$0xf]
        %v912 = vld [vmem:[#allocation7 + $0x210] sm:$0xf]
        %v913 = vld [vmem:[#allocation7 + $0x214] sm:$0xf]
        %v914 = vld [vmem:[#allocation7 + $0x218] sm:$0xf]
        %v915 = vld [vmem:[#allocation7 + $0x21c] sm:$0xf]
        %v916 = vld [vmem:[#allocation7 + $0x220] sm:$0xf]
        %v917 = vld [vmem:[#allocation7 + $0x224] sm:$0xf]
        %v918 = vld [vmem:[#allocation7 + $0x228] sm:$0xf]
        %v919 = vld [vmem:[#allocation7 + $0x22c] sm:$0xf]
        %v920 = vld [vmem:[#allocation7 + $0x230] sm:$0xf]
        %v921 = vld [vmem:[#allocation7 + $0x234] sm:$0xf]
        %v922 = vld [vmem:[#allocation7 + $0x238] sm:$0xf]
        %v923 = vld [vmem:[#allocation7 + $0x23c] sm:$0xf]
        %v1068 = vunpack.c.l.b16 %v780
        %v1069 = vunpack.c.l.b16 %v781
        %v1070 = vunpack.c.l.b16 %v782
        %v1071 = vunpack.c.l.b16 %v783
        %v1072 = vunpack.c.l.b16 %v784
        %v1073 = vunpack.c.l.b16 %v785
        %v1074 = vunpack.c.l.b16 %v786
        %v1075 = vunpack.c.l.b16 %v787
        %v1076 = vunpack.c.l.b16 %v788
        %v1077 = vunpack.c.l.b16 %v789
        %v1078 = vunpack.c.l.b16 %v790
        %v1079 = vunpack.c.l.b16 %v791
        %v1080 = vunpack.c.l.b16 %v792
        %v1081 = vunpack.c.l.b16 %v793
        %v1082 = vunpack.c.l.b16 %v794
        %v1083 = vunpack.c.l.b16 %v795
        %v1084 = vunpack.c.l.b16 %v796
        %v1085 = vunpack.c.l.b16 %v797
        %v1086 = vunpack.c.l.b16 %v798
        %v1087 = vunpack.c.l.b16 %v799
        %v1088 = vunpack.c.l.b16 %v800
        %v1089 = vunpack.c.l.b16 %v801
        %v1090 = vunpack.c.l.b16 %v802
        %v1091 = vunpack.c.l.b16 %v803
        %v1092 = vunpack.c.l.b16 %v804
        %v1093 = vunpack.c.l.b16 %v805
        %v1094 = vunpack.c.l.b16 %v806
        %v1095 = vunpack.c.l.b16 %v807
        %v1096 = vunpack.c.l.b16 %v808
        %v1097 = vunpack.c.l.b16 %v809
        %v1098 = vunpack.c.l.b16 %v810
        %v1099 = vunpack.c.l.b16 %v811
        %v1100 = vunpack.c.l.b16 %v812
        %v1101 = vunpack.c.l.b16 %v813
        %v1102 = vunpack.c.l.b16 %v814
        %v1103 = vunpack.c.l.b16 %v815
        %v1104 = vunpack.c.l.b16 %v816
        %v1105 = vunpack.c.l.b16 %v817
        %v1106 = vunpack.c.l.b16 %v818
        %v1107 = vunpack.c.l.b16 %v819
        %v1108 = vunpack.c.l.b16 %v820
        %v1109 = vunpack.c.l.b16 %v821
        %v1110 = vunpack.c.l.b16 %v822
        %v1111 = vunpack.c.l.b16 %v823
        %v1112 = vunpack.c.l.b16 %v824
        %v1113 = vunpack.c.l.b16 %v825
        %v1114 = vunpack.c.l.b16 %v826
        %v1115 = vunpack.c.l.b16 %v827
        %v1116 = vunpack.c.l.b16 %v828
        %v1117 = vunpack.c.l.b16 %v829
        %v1118 = vunpack.c.l.b16 %v830
        %v1119 = vunpack.c.l.b16 %v831
        %v1120 = vunpack.c.l.b16 %v832
        %v1121 = vunpack.c.l.b16 %v833
        %v1122 = vunpack.c.l.b16 %v834
        %v1123 = vunpack.c.l.b16 %v835
        %v1124 = vunpack.c.l.b16 %v836
        %v1125 = vunpack.c.l.b16 %v837
        %v1126 = vunpack.c.l.b16 %v838
        %v1127 = vunpack.c.l.b16 %v839
        %v1128 = vunpack.c.l.b16 %v840
        %v1129 = vunpack.c.l.b16 %v841
        %v1130 = vunpack.c.l.b16 %v842
        %v1131 = vunpack.c.l.b16 %v843
        %v1132 = vunpack.c.l.b16 %v844
        %v1133 = vunpack.c.l.b16 %v845
        %v1134 = vunpack.c.l.b16 %v846
        %v1135 = vunpack.c.l.b16 %v847
        %v1136 = vunpack.c.l.b16 %v848
        %v1137 = vunpack.c.l.b16 %v849
        %v1138 = vunpack.c.l.b16 %v850
        %v1139 = vunpack.c.l.b16 %v851
        %v1140 = vunpack.c.l.b16 %v852
        %v1141 = vunpack.c.l.b16 %v853
        %v1142 = vunpack.c.l.b16 %v854
        %v1143 = vunpack.c.l.b16 %v855
        %v1144 = vunpack.c.l.b16 %v856
        %v1145 = vunpack.c.l.b16 %v857
        %v1146 = vunpack.c.l.b16 %v858
        %v1147 = vunpack.c.l.b16 %v859
        %v1148 = vunpack.c.l.b16 %v860
        %v1149 = vunpack.c.l.b16 %v861
        %v1150 = vunpack.c.l.b16 %v862
        %v1151 = vunpack.c.l.b16 %v863
        %v1152 = vunpack.c.l.b16 %v864
        %v1153 = vunpack.c.l.b16 %v865
        %v1154 = vunpack.c.l.b16 %v866
        %v1155 = vunpack.c.l.b16 %v867
        %v1156 = vunpack.c.l.b16 %v868
        %v1157 = vunpack.c.l.b16 %v869
        %v1158 = vunpack.c.l.b16 %v870
        %v1159 = vunpack.c.l.b16 %v871
        %v1160 = vunpack.c.l.b16 %v872
        %v1161 = vunpack.c.l.b16 %v873
        %v1162 = vunpack.c.l.b16 %v874
        %v1163 = vunpack.c.l.b16 %v875
        %v1164 = vunpack.c.l.b16 %v876
        %v1165 = vunpack.c.l.b16 %v877
        %v1166 = vunpack.c.l.b16 %v878
        %v1167 = vunpack.c.l.b16 %v879
        %v1168 = vunpack.c.l.b16 %v880
        %v1169 = vunpack.c.l.b16 %v881
        %v1170 = vunpack.c.l.b16 %v882
        %v1171 = vunpack.c.l.b16 %v883
        %v1172 = vunpack.c.l.b16 %v884
        %v1173 = vunpack.c.l.b16 %v885
        %v1174 = vunpack.c.l.b16 %v886
        %v1175 = vunpack.c.l.b16 %v887
        %v1176 = vunpack.c.l.b16 %v888
        %v1177 = vunpack.c.l.b16 %v889
        %v1178 = vunpack.c.l.b16 %v890
        %v1179 = vunpack.c.l.b16 %v891
        %v1180 = vunpack.c.l.b16 %v892
        %v1181 = vunpack.c.l.b16 %v893
        %v1182 = vunpack.c.l.b16 %v894
        %v1183 = vunpack.c.l.b16 %v895
        %v1184 = vunpack.c.l.b16 %v896
        %v1185 = vunpack.c.l.b16 %v897
        %v1186 = vunpack.c.l.b16 %v898
        %v1187 = vunpack.c.l.b16 %v899
        %v1188 = vunpack.c.l.b16 %v900
        %v1189 = vunpack.c.l.b16 %v901
        %v1190 = vunpack.c.l.b16 %v902
        %v1191 = vunpack.c.l.b16 %v903
        %v1192 = vunpack.c.l.b16 %v904
        %v1193 = vunpack.c.l.b16 %v905
        %v1194 = vunpack.c.l.b16 %v906
        %v1195 = vunpack.c.l.b16 %v907
        %v1196 = vunpack.c.l.b16 %v908
        %v1197 = vunpack.c.l.b16 %v909
        %v1198 = vunpack.c.l.b16 %v910
        %v1199 = vunpack.c.l.b16 %v911
        %v1200 = vunpack.c.l.b16 %v912
        %v1201 = vunpack.c.l.b16 %v913
        %v1202 = vunpack.c.l.b16 %v914
        %v1203 = vunpack.c.l.b16 %v915
        %v1204 = vunpack.c.l.b16 %v916
        %v1205 = vunpack.c.l.b16 %v917
        %v1206 = vunpack.c.l.b16 %v918
        %v1207 = vunpack.c.l.b16 %v919
        %v1208 = vunpack.c.l.b16 %v920
        %v1209 = vunpack.c.l.b16 %v921
        %v1210 = vunpack.c.l.b16 %v922
        %v1211 = vunpack.c.l.b16 %v923
        %v1212 = vpack.c.b16 %v1069, %v1068
        %v1213 = vpack.c.b16 %v1071, %v1070
        %v1214 = vpack.c.b16 %v1073, %v1072
        %v1215 = vpack.c.b16 %v1075, %v1074
        %v1216 = vpack.c.b16 %v1077, %v1076
        %v1217 = vpack.c.b16 %v1079, %v1078
        %v1218 = vpack.c.b16 %v1081, %v1080
        %v1219 = vpack.c.b16 %v1083, %v1082
        %v1220 = vpack.c.b16 %v1085, %v1084
        %v1221 = vpack.c.b16 %v1087, %v1086
        %v1222 = vpack.c.b16 %v1089, %v1088
        %v1223 = vpack.c.b16 %v1091, %v1090
        %v1224 = vpack.c.b16 %v1093, %v1092
        %v1225 = vpack.c.b16 %v1095, %v1094
        %v1226 = vpack.c.b16 %v1097, %v1096
        %v1227 = vpack.c.b16 %v1099, %v1098
        %v1228 = vpack.c.b16 %v1101, %v1100
        %v1229 = vpack.c.b16 %v1103, %v1102
        %v1230 = vpack.c.b16 %v1105, %v1104
        %v1231 = vpack.c.b16 %v1107, %v1106
        %v1232 = vpack.c.b16 %v1109, %v1108
        %v1233 = vpack.c.b16 %v1111, %v1110
        %v1234 = vpack.c.b16 %v1113, %v1112
        %v1235 = vpack.c.b16 %v1115, %v1114
        %v1236 = vpack.c.b16 %v1117, %v1116
        %v1237 = vpack.c.b16 %v1119, %v1118
        %v1238 = vpack.c.b16 %v1121, %v1120
        %v1239 = vpack.c.b16 %v1123, %v1122
        %v1240 = vpack.c.b16 %v1125, %v1124
        %v1241 = vpack.c.b16 %v1127, %v1126
        %v1242 = vpack.c.b16 %v1129, %v1128
        %v1243 = vpack.c.b16 %v1131, %v1130
        %v1244 = vpack.c.b16 %v1133, %v1132
        %v1245 = vpack.c.b16 %v1135, %v1134
        %v1246 = vpack.c.b16 %v1137, %v1136
        %v1247 = vpack.c.b16 %v1139, %v1138
        %v1248 = vpack.c.b16 %v1141, %v1140
        %v1249 = vpack.c.b16 %v1143, %v1142
        %v1250 = vpack.c.b16 %v1145, %v1144
        %v1251 = vpack.c.b16 %v1147, %v1146
        %v1252 = vpack.c.b16 %v1149, %v1148
        %v1253 = vpack.c.b16 %v1151, %v1150
        %v1254 = vpack.c.b16 %v1153, %v1152
        %v1255 = vpack.c.b16 %v1155, %v1154
        %v1256 = vpack.c.b16 %v1157, %v1156
        %v1257 = vpack.c.b16 %v1159, %v1158
        %v1258 = vpack.c.b16 %v1161, %v1160
        %v1259 = vpack.c.b16 %v1163, %v1162
        %v1260 = vpack.c.b16 %v1165, %v1164
        %v1261 = vpack.c.b16 %v1167, %v1166
        %v1262 = vpack.c.b16 %v1169, %v1168
        %v1263 = vpack.c.b16 %v1171, %v1170
        %v1264 = vpack.c.b16 %v1173, %v1172
        %v1265 = vpack.c.b16 %v1175, %v1174
        %v1266 = vpack.c.b16 %v1177, %v1176
        %v1267 = vpack.c.b16 %v1179, %v1178
        %v1268 = vpack.c.b16 %v1181, %v1180
        %v1269 = vpack.c.b16 %v1183, %v1182
        %v1270 = vpack.c.b16 %v1185, %v1184
        %v1271 = vpack.c.b16 %v1187, %v1186
        %v1272 = vpack.c.b16 %v1189, %v1188
        %v1273 = vpack.c.b16 %v1191, %v1190
        %v1274 = vpack.c.b16 %v1193, %v1192
        %v1275 = vpack.c.b16 %v1195, %v1194
        %v1276 = vpack.c.b16 %v1197, %v1196
        %v1277 = vpack.c.b16 %v1199, %v1198
        %v1278 = vpack.c.b16 %v1201, %v1200
        %v1279 = vpack.c.b16 %v1203, %v1202
        %v1280 = vpack.c.b16 %v1205, %v1204
        %v1281 = vpack.c.b16 %v1207, %v1206
        %v1282 = vpack.c.b16 %v1209, %v1208
        %v1283 = vpack.c.b16 %v1211, %v1210
        %1356 = vmatpush.bf16.msra.mxu0 %v1219
        %1357 = vmatpush.bf16.msra.mxu0 %v1218
        %1358 = vmatpush.bf16.msra.mxu0 %v1217
        %1359 = vmatpush.bf16.msra.mxu0 %v1216
        %1360 = vmatpush.bf16.msra.mxu0 %v1215
        %1361 = vmatpush.bf16.msra.mxu0 %v1214
        %1362 = vmatpush.bf16.msra.mxu0 %v1213
        %1363 = vmatpush.bf16.msra.mxu0 %v1212
        %1364 = vmatmul.bf16.gmra.mxu0 %v580
        %v1365 = vpop.f32.mrf.mxu0
        %v1366 = vadd.f32 0.0, %v1365
        %v1367 = vpop.f32.mrf.mxu0
        %v1368 = vadd.f32 0.0, %v1367
        %1369 = vmatmul.bf16.gmra.mxu0 %v581
        %v1370 = vpop.f32.mrf.mxu0
        %v1371 = vadd.f32 0.0, %v1370
        %v1372 = vpop.f32.mrf.mxu0
        %v1373 = vadd.f32 0.0, %v1372
        %1374 = vmatmul.bf16.gmra.mxu0 %v582
        %v1375 = vpop.f32.mrf.mxu0
        %v1376 = vadd.f32 0.0, %v1375
        %v1377 = vpop.f32.mrf.mxu0
        %v1378 = vadd.f32 0.0, %v1377
        %1379 = vmatmul.bf16.gmra.mxu0 %v583
        %v1380 = vpop.f32.mrf.mxu0
        %v1381 = vadd.f32 0.0, %v1380
        %v1382 = vpop.f32.mrf.mxu0
        %v1383 = vadd.f32 0.0, %v1382
        %1384 = vdwg.mxu0
        %1385 = vmatpush.bf16.msra.mxu0 %v1227
        %1386 = vmatpush.bf16.msra.mxu0 %v1226
        %1387 = vmatpush.bf16.msra.mxu0 %v1225
        %1388 = vmatpush.bf16.msra.mxu0 %v1224
        %1389 = vmatpush.bf16.msra.mxu0 %v1223
        %1390 = vmatpush.bf16.msra.mxu0 %v1222
        %1391 = vmatpush.bf16.msra.mxu0 %v1221
        %1392 = vmatpush.bf16.msra.mxu0 %v1220
        %1393 = vmatmul.bf16.gmra.mxu0 %v604
        %v1394 = vpop.f32.mrf.mxu0
        %v1395 = vadd.f32 %v1366, %v1394
        %v1396 = vpop.f32.mrf.mxu0
        %v1397 = vadd.f32 %v1368, %v1396
        %1398 = vmatmul.bf16.gmra.mxu0 %v605
        %v1399 = vpop.f32.mrf.mxu0
        %v1400 = vadd.f32 %v1371, %v1399
        %v1401 = vpop.f32.mrf.mxu0
        %v1402 = vadd.f32 %v1373, %v1401
        %1403 = vmatmul.bf16.gmra.mxu0 %v606
        %v1404 = vpop.f32.mrf.mxu0
        %v1405 = vadd.f32 %v1376, %v1404
        %v1406 = vpop.f32.mrf.mxu0
        %v1407 = vadd.f32 %v1378, %v1406
        %1408 = vmatmul.bf16.gmra.mxu0 %v607
        %v1409 = vpop.f32.mrf.mxu0
        %v1410 = vadd.f32 %v1381, %v1409
        %v1411 = vpop.f32.mrf.mxu0
        %v1412 = vadd.f32 %v1383, %v1411
        %1413 = vdwg.mxu0
        %1414 = vmatpush.bf16.msra.mxu0 %v1235
        %1415 = vmatpush.bf16.msra.mxu0 %v1234
        %1416 = vmatpush.bf16.msra.mxu0 %v1233
        %1417 = vmatpush.bf16.msra.mxu0 %v1232
        %1418 = vmatpush.bf16.msra.mxu0 %v1231
        %1419 = vmatpush.bf16.msra.mxu0 %v1230
        %1420 = vmatpush.bf16.msra.mxu0 %v1229
        %1421 = vmatpush.bf16.msra.mxu0 %v1228
        %1422 = vmatmul.bf16.gmra.mxu0 %v628
        %v1423 = vpop.f32.mrf.mxu0
        %v1424 = vadd.f32 %v1395, %v1423
        %v1425 = vpop.f32.mrf.mxu0
        %v1426 = vadd.f32 %v1397, %v1425
        %1427 = vmatmul.bf16.gmra.mxu0 %v629
        %v1428 = vpop.f32.mrf.mxu0
        %v1429 = vadd.f32 %v1400, %v1428
        %v1430 = vpop.f32.mrf.mxu0
        %v1431 = vadd.f32 %v1402, %v1430
        %1432 = vmatmul.bf16.gmra.mxu0 %v630
        %v1433 = vpop.f32.mrf.mxu0
        %v1434 = vadd.f32 %v1405, %v1433
        %v1435 = vpop.f32.mrf.mxu0
        %v1436 = vadd.f32 %v1407, %v1435
        %1437 = vmatmul.bf16.gmra.mxu0 %v631
        %v1438 = vpop.f32.mrf.mxu0
        %v1439 = vadd.f32 %v1410, %v1438
        %v1440 = vpop.f32.mrf.mxu0
        %v1441 = vadd.f32 %v1412, %v1440
        %1442 = vdwg.mxu0
        %1443 = vmatpush.bf16.msra.mxu0 %v1243
        %1444 = vmatpush.bf16.msra.mxu0 %v1242
        %1445 = vmatpush.bf16.msra.mxu0 %v1241
        %1446 = vmatpush.bf16.msra.mxu0 %v1240
        %1447 = vmatpush.bf16.msra.mxu0 %v1239
        %1448 = vmatpush.bf16.msra.mxu0 %v1238
        %1449 = vmatpush.bf16.msra.mxu0 %v1237
        %1450 = vmatpush.bf16.msra.mxu0 %v1236
        %1451 = vmatmul.bf16.gmra.mxu0 %v652
        %v1452 = vpop.f32.mrf.mxu0
        %v1453 = vadd.f32 %v1424, %v1452
        %v1454 = vpop.f32.mrf.mxu0
        %v1455 = vadd.f32 %v1426, %v1454
        %1456 = vmatmul.bf16.gmra.mxu0 %v653
        %v1457 = vpop.f32.mrf.mxu0
        %v1458 = vadd.f32 %v1429, %v1457
        %v1459 = vpop.f32.mrf.mxu0
        %v1460 = vadd.f32 %v1431, %v1459
        %1461 = vmatmul.bf16.gmra.mxu0 %v654
        %v1462 = vpop.f32.mrf.mxu0
        %v1463 = vadd.f32 %v1434, %v1462
        %v1464 = vpop.f32.mrf.mxu0
        %v1465 = vadd.f32 %v1436, %v1464
        %1466 = vmatmul.bf16.gmra.mxu0 %v655
        %v1467 = vpop.f32.mrf.mxu0
        %v1468 = vadd.f32 %v1439, %v1467
        %v1469 = vpop.f32.mrf.mxu0
        %v1470 = vadd.f32 %v1441, %v1469
        %1471 = vdwg.mxu0
        %1472 = vmatpush.bf16.msra.mxu0 %v1251
        %1473 = vmatpush.bf16.msra.mxu0 %v1250
        %1474 = vmatpush.bf16.msra.mxu0 %v1249
        %1475 = vmatpush.bf16.msra.mxu0 %v1248
        %1476 = vmatpush.bf16.msra.mxu0 %v1247
        %1477 = vmatpush.bf16.msra.mxu0 %v1246
        %1478 = vmatpush.bf16.msra.mxu0 %v1245
        %1479 = vmatpush.bf16.msra.mxu0 %v1244
        %1480 = vmatmul.bf16.gmra.mxu0 %v676
        %v1481 = vpop.f32.mrf.mxu0
        %v1482 = vadd.f32 %v1453, %v1481
        %v1483 = vpop.f32.mrf.mxu0
        %v1484 = vadd.f32 %v1455, %v1483
        %1485 = vmatmul.bf16.gmra.mxu0 %v677
        %v1486 = vpop.f32.mrf.mxu0
        %v1487 = vadd.f32 %v1458, %v1486
        %v1488 = vpop.f32.mrf.mxu0
        %v1489 = vadd.f32 %v1460, %v1488
        %1490 = vmatmul.bf16.gmra.mxu0 %v678
        %v1491 = vpop.f32.mrf.mxu0
        %v1492 = vadd.f32 %v1463, %v1491
        %v1493 = vpop.f32.mrf.mxu0
        %v1494 = vadd.f32 %v1465, %v1493
        %1495 = vmatmul.bf16.gmra.mxu0 %v679
        %v1496 = vpop.f32.mrf.mxu0
        %v1497 = vadd.f32 %v1468, %v1496
        %v1498 = vpop.f32.mrf.mxu0
        %v1499 = vadd.f32 %v1470, %v1498
        %1500 = vdwg.mxu0
        %1501 = vmatpush.bf16.msra.mxu0 %v1259
        %1502 = vmatpush.bf16.msra.mxu0 %v1258
        %1503 = vmatpush.bf16.msra.mxu0 %v1257
        %1504 = vmatpush.bf16.msra.mxu0 %v1256
        %1505 = vmatpush.bf16.msra.mxu0 %v1255
        %1506 = vmatpush.bf16.msra.mxu0 %v1254
        %1507 = vmatpush.bf16.msra.mxu0 %v1253
        %1508 = vmatpush.bf16.msra.mxu0 %v1252
        %1509 = vmatmul.bf16.gmra.mxu0 %v700
        %v1510 = vpop.f32.mrf.mxu0
        %v1511 = vadd.f32 %v1482, %v1510
        %v1512 = vpop.f32.mrf.mxu0
        %v1513 = vadd.f32 %v1484, %v1512
        %1514 = vmatmul.bf16.gmra.mxu0 %v701
        %v1515 = vpop.f32.mrf.mxu0
        %v1516 = vadd.f32 %v1487, %v1515
        %v1517 = vpop.f32.mrf.mxu0
        %v1518 = vadd.f32 %v1489, %v1517
        %1519 = vmatmul.bf16.gmra.mxu0 %v702
        %v1520 = vpop.f32.mrf.mxu0
        %v1521 = vadd.f32 %v1492, %v1520
        %v1522 = vpop.f32.mrf.mxu0
        %v1523 = vadd.f32 %v1494, %v1522
        %1524 = vmatmul.bf16.gmra.mxu0 %v703
        %v1525 = vpop.f32.mrf.mxu0
        %v1526 = vadd.f32 %v1497, %v1525
        %v1527 = vpop.f32.mrf.mxu0
        %v1528 = vadd.f32 %v1499, %v1527
        %1529 = vdwg.mxu0
        %1530 = vmatpush.bf16.msra.mxu0 %v1267
        %1531 = vmatpush.bf16.msra.mxu0 %v1266
        %1532 = vmatpush.bf16.msra.mxu0 %v1265
        %1533 = vmatpush.bf16.msra.mxu0 %v1264
        %1534 = vmatpush.bf16.msra.mxu0 %v1263
        %1535 = vmatpush.bf16.msra.mxu0 %v1262
        %1536 = vmatpush.bf16.msra.mxu0 %v1261
        %1537 = vmatpush.bf16.msra.mxu0 %v1260
        %1538 = vmatmul.bf16.gmra.mxu0 %v724
        %v1539 = vpop.f32.mrf.mxu0
        %v1540 = vadd.f32 %v1511, %v1539
        %v1541 = vpop.f32.mrf.mxu0
        %v1542 = vadd.f32 %v1513, %v1541
        %1543 = vmatmul.bf16.gmra.mxu0 %v725
        %v1544 = vpop.f32.mrf.mxu0
        %v1545 = vadd.f32 %v1516, %v1544
        %v1546 = vpop.f32.mrf.mxu0
        %v1547 = vadd.f32 %v1518, %v1546
        %1548 = vmatmul.bf16.gmra.mxu0 %v726
        %v1549 = vpop.f32.mrf.mxu0
        %v1550 = vadd.f32 %v1521, %v1549
        %v1551 = vpop.f32.mrf.mxu0
        %v1552 = vadd.f32 %v1523, %v1551
        %1553 = vmatmul.bf16.gmra.mxu0 %v727
        %v1554 = vpop.f32.mrf.mxu0
        %v1555 = vadd.f32 %v1526, %v1554
        %v1556 = vpop.f32.mrf.mxu0
        %v1557 = vadd.f32 %v1528, %v1556
        %1558 = vdwg.mxu0
        %1559 = vmatpush.bf16.msra.mxu0 %v1275
        %1560 = vmatpush.bf16.msra.mxu0 %v1274
        %1561 = vmatpush.bf16.msra.mxu0 %v1273
        %1562 = vmatpush.bf16.msra.mxu0 %v1272
        %1563 = vmatpush.bf16.msra.mxu0 %v1271
        %1564 = vmatpush.bf16.msra.mxu0 %v1270
        %1565 = vmatpush.bf16.msra.mxu0 %v1269
        %1566 = vmatpush.bf16.msra.mxu0 %v1268
        %1567 = vmatmul.bf16.gmra.mxu0 %v748
        %v1568 = vpop.f32.mrf.mxu0
        %v1569 = vadd.f32 %v1540, %v1568
        %v1570 = vpop.f32.mrf.mxu0
        %v1571 = vadd.f32 %v1542, %v1570
        %1572 = vmatmul.bf16.gmra.mxu0 %v749
        %v1573 = vpop.f32.mrf.mxu0
        %v1574 = vadd.f32 %v1545, %v1573
        %v1575 = vpop.f32.mrf.mxu0
        %v1576 = vadd.f32 %v1547, %v1575
        %1577 = vmatmul.bf16.gmra.mxu0 %v750
        %v1578 = vpop.f32.mrf.mxu0
        %v1579 = vadd.f32 %v1550, %v1578
        %v1580 = vpop.f32.mrf.mxu0
        %v1581 = vadd.f32 %v1552, %v1580
        %1582 = vmatmul.bf16.gmra.mxu0 %v751
        %v1583 = vpop.f32.mrf.mxu0
        %v1584 = vadd.f32 %v1555, %v1583
        %v1585 = vpop.f32.mrf.mxu0
        %v1586 = vadd.f32 %v1557, %v1585
        %1587 = vdwg.mxu0
        %1588 = vmatpush.bf16.msra.mxu0 %v1283
        %1589 = vmatpush.bf16.msra.mxu0 %v1282
        %1590 = vmatpush.bf16.msra.mxu0 %v1281
        %1591 = vmatpush.bf16.msra.mxu0 %v1280
        %1592 = vmatpush.bf16.msra.mxu0 %v1279
        %1593 = vmatpush.bf16.msra.mxu0 %v1278
        %1594 = vmatpush.bf16.msra.mxu0 %v1277
        %1595 = vmatpush.bf16.msra.mxu0 %v1276
        %1596 = vmatmul.bf16.gmra.mxu0 %v772
        %v1597 = vpop.f32.mrf.mxu0
        %v1598 = vadd.f32 %v1569, %v1597
        %v1599 = vpop.f32.mrf.mxu0
        %v1600 = vadd.f32 %v1571, %v1599
        %1601 = vmatmul.bf16.gmra.mxu0 %v773
        %v1602 = vpop.f32.mrf.mxu0
        %v1603 = vadd.f32 %v1574, %v1602
        %v1604 = vpop.f32.mrf.mxu0
        %v1605 = vadd.f32 %v1576, %v1604
        %1606 = vmatmul.bf16.gmra.mxu0 %v774
        %v1607 = vpop.f32.mrf.mxu0
        %v1608 = vadd.f32 %v1579, %v1607
        %v1609 = vpop.f32.mrf.mxu0
        %v1610 = vadd.f32 %v1581, %v1609
        %1611 = vmatmul.bf16.gmra.mxu0 %v775
        %v1612 = vpop.f32.mrf.mxu0
        %v1613 = vadd.f32 %v1584, %v1612
        %v1614 = vpop.f32.mrf.mxu0
        %v1615 = vadd.f32 %v1586, %v1614
        %1616 = vdwg.mxu0
        %v1617 = vld [vmem:[%s2] sm:$0x1]
        %v1619 = vperm.slane %v1617, 0
        %v1621 = vmul.f32 %v1598, %v1619
        %v1622 = vmul.f32 %v1600, %v1619
        %v1623 = vmul.f32 %v1603, %v1619
        %v1624 = vmul.f32 %v1605, %v1619
        %v1625 = vmul.f32 %v1608, %v1619
        %v1626 = vmul.f32 %v1610, %v1619
        %v1627 = vmul.f32 %v1613, %v1619
        %v1628 = vmul.f32 %v1615, %v1619
        %v1629 = vld [vmem:[%s3] sm:$0x1]
        %v1631 = vperm.slane %v1629, 0
        %v1633 = vadd.f32 %v1621, %v1631
        %v1634 = vadd.f32 %v1622, %v1631
        %v1635 = vadd.f32 %v1623, %v1631
        %v1636 = vadd.f32 %v1624, %v1631
        %v1637 = vadd.f32 %v1625, %v1631
        %v1638 = vadd.f32 %v1626, %v1631
        %v1639 = vadd.f32 %v1627, %v1631
        %v1640 = vadd.f32 %v1628, %v1631
        %v1641 = vmax.f32 %v1633, 0.0
        %v1642 = vmax.f32 %v1634, 0.0
        %v1643 = vmax.f32 %v1635, 0.0
        %v1644 = vmax.f32 %v1636, 0.0
        %v1645 = vmax.f32 %v1637, 0.0
        %v1646 = vmax.f32 %v1638, 0.0
        %v1647 = vmax.f32 %v1639, 0.0
        %v1648 = vmax.f32 %v1640, 0.0
        %1649 = vst [vmem:[#allocation3] sm:$0xff] 0.0
        %1650 = vst [vmem:[#allocation3 + $0x8] sm:$0x3] 0.0
        %s1651 = scalar_lea.vmem [#allocation3], 144
        %1652 = vst [vmem:[%s1651] sm:$0xff] 0.0
        %1653 = vst [vmem:[%s1651 + $0x8] sm:$0x3] 0.0
        %s1654 = scalar_lea.vmem [#allocation3], 16
        %1655 = vst [vmem:[%s1654] sm:$0x1] 0.0
        %1656 = vst [vmem:[%s1654 + $0x10] sm:$0x1] 0.0
        %1657 = vst [vmem:[%s1654 + $0x20] sm:$0x1] 0.0
        %1658 = vst [vmem:[%s1654 + $0x30] sm:$0x1] 0.0
        %1659 = vst [vmem:[%s1654 + $0x40] sm:$0x1] 0.0
        %1660 = vst [vmem:[%s1654 + $0x50] sm:$0x1] 0.0
        %1661 = vst [vmem:[%s1654 + $0x60] sm:$0x1] 0.0
        %1662 = vst [vmem:[%s1654 + $0x70] sm:$0x1] 0.0
        %1663 = vst [vmem:[%s1654 + $0x9] sm:$0x1] 0.0
        %1664 = vst [vmem:[%s1654 + $0x19] sm:$0x1] 0.0
        %1665 = vst [vmem:[%s1654 + $0x29] sm:$0x1] 0.0
        %1666 = vst [vmem:[%s1654 + $0x39] sm:$0x1] 0.0
        %1667 = vst [vmem:[%s1654 + $0x49] sm:$0x1] 0.0
        %1668 = vst [vmem:[%s1654 + $0x59] sm:$0x1] 0.0
        %1669 = vst [vmem:[%s1654 + $0x69] sm:$0x1] 0.0
        %1670 = vst [vmem:[%s1654 + $0x79] sm:$0x1] 0.0
        %1671 = vst [vmem:[%s1654 + $0x1] sm:$0xff] %v1641
        %1672 = vst [vmem:[%s1654 + $0x11] sm:$0xff] %v1642
        %1673 = vst [vmem:[%s1654 + $0x21] sm:$0xff] %v1643
        %1674 = vst [vmem:[%s1654 + $0x31] sm:$0xff] %v1644
        %1675 = vst [vmem:[%s1654 + $0x41] sm:$0xff] %v1645
        %1676 = vst [vmem:[%s1654 + $0x51] sm:$0xff] %v1646
        %1677 = vst [vmem:[%s1654 + $0x61] sm:$0xff] %v1647
        %1678 = vst [vmem:[%s1654 + $0x71] sm:$0xff] %v1648
        %v1679 = vld [vmem:[#allocation3] sm:$0xff]
        %v1680 = vld [vmem:[#allocation3 + $0x10] sm:$0xff]
        %v1681 = vld [vmem:[#allocation3 + $0x20] sm:$0xff]
        %v1682 = vld [vmem:[#allocation3 + $0x30] sm:$0xff]
        %v1683 = vld [vmem:[#allocation3 + $0x40] sm:$0xff]
        %v1684 = vld [vmem:[#allocation3 + $0x50] sm:$0xff]
        %v1685 = vld [vmem:[#allocation3 + $0x60] sm:$0xff]
        %v1686 = vld [vmem:[#allocation3 + $0x70] sm:$0xff]
        %v1687 = vpack.c.bf16 %v1679, %v1679
        %v1688 = vpack.c.bf16 %v1680, %v1680
        %v1689 = vpack.c.bf16 %v1681, %v1681
        %v1690 = vpack.c.bf16 %v1682, %v1682
        %v1691 = vpack.c.bf16 %v1683, %v1683
        %v1692 = vpack.c.bf16 %v1684, %v1684
        %v1693 = vpack.c.bf16 %v1685, %v1685
        %v1694 = vpack.c.bf16 %v1686, %v1686
        %v1695 = vld [vmem:[#allocation3 + $0x1] sm:$0xff]
        %v1696 = vld [vmem:[#allocation3 + $0x11] sm:$0xff]
        %v1697 = vld [vmem:[#allocation3 + $0x21] sm:$0xff]
        %v1698 = vld [vmem:[#allocation3 + $0x31] sm:$0xff]
        %v1699 = vld [vmem:[#allocation3 + $0x41] sm:$0xff]
        %v1700 = vld [vmem:[#allocation3 + $0x51] sm:$0xff]
        %v1701 = vld [vmem:[#allocation3 + $0x61] sm:$0xff]
        %v1702 = vld [vmem:[#allocation3 + $0x71] sm:$0xff]
        %v1703 = vpack.c.bf16 %v1695, %v1695
        %v1704 = vpack.c.bf16 %v1696, %v1696
        %v1705 = vpack.c.bf16 %v1697, %v1697
        %v1706 = vpack.c.bf16 %v1698, %v1698
        %v1707 = vpack.c.bf16 %v1699, %v1699
        %v1708 = vpack.c.bf16 %v1700, %v1700
        %v1709 = vpack.c.bf16 %v1701, %v1701
        %v1710 = vpack.c.bf16 %v1702, %v1702
        %v1711 = vld [vmem:[#allocation3 + $0x2] sm:$0xff]
        %v1712 = vld [vmem:[#allocation3 + $0x12] sm:$0xff]
        %v1713 = vld [vmem:[#allocation3 + $0x22] sm:$0xff]
        %v1714 = vld [vmem:[#allocation3 + $0x32] sm:$0xff]
        %v1715 = vld [vmem:[#allocation3 + $0x42] sm:$0xff]
        %v1716 = vld [vmem:[#allocation3 + $0x52] sm:$0xff]
        %v1717 = vld [vmem:[#allocation3 + $0x62] sm:$0xff]
        %v1718 = vld [vmem:[#allocation3 + $0x72] sm:$0xff]
        %v1719 = vpack.c.bf16 %v1711, %v1711
        %v1720 = vpack.c.bf16 %v1712, %v1712
        %v1721 = vpack.c.bf16 %v1713, %v1713
        %v1722 = vpack.c.bf16 %v1714, %v1714
        %v1723 = vpack.c.bf16 %v1715, %v1715
        %v1724 = vpack.c.bf16 %v1716, %v1716
        %v1725 = vpack.c.bf16 %v1717, %v1717
        %v1726 = vpack.c.bf16 %v1718, %v1718
        %v1727 = vld [vmem:[%s1654] sm:$0xff]
        %v1728 = vld [vmem:[%s1654 + $0x10] sm:$0xff]
        %v1729 = vld [vmem:[%s1654 + $0x20] sm:$0xff]
        %v1730 = vld [vmem:[%s1654 + $0x30] sm:$0xff]
        %v1731 = vld [vmem:[%s1654 + $0x40] sm:$0xff]
        %v1732 = vld [vmem:[%s1654 + $0x50] sm:$0xff]
        %v1733 = vld [vmem:[%s1654 + $0x60] sm:$0xff]
        %v1734 = vld [vmem:[%s1654 + $0x70] sm:$0xff]
        %v1735 = vpack.c.bf16 %v1727, %v1727
        %v1736 = vpack.c.bf16 %v1728, %v1728
        %v1737 = vpack.c.bf16 %v1729, %v1729
        %v1738 = vpack.c.bf16 %v1730, %v1730
        %v1739 = vpack.c.bf16 %v1731, %v1731
        %v1740 = vpack.c.bf16 %v1732, %v1732
        %v1741 = vpack.c.bf16 %v1733, %v1733
        %v1742 = vpack.c.bf16 %v1734, %v1734
        %v1743 = vld [vmem:[%s1654 + $0x1] sm:$0xff]
        %v1744 = vld [vmem:[%s1654 + $0x11] sm:$0xff]
        %v1745 = vld [vmem:[%s1654 + $0x21] sm:$0xff]
        %v1746 = vld [vmem:[%s1654 + $0x31] sm:$0xff]
        %v1747 = vld [vmem:[%s1654 + $0x41] sm:$0xff]
        %v1748 = vld [vmem:[%s1654 + $0x51] sm:$0xff]
        %v1749 = vld [vmem:[%s1654 + $0x61] sm:$0xff]
        %v1750 = vld [vmem:[%s1654 + $0x71] sm:$0xff]
        %v1751 = vpack.c.bf16 %v1743, %v1743
        %v1752 = vpack.c.bf16 %v1744, %v1744
        %v1753 = vpack.c.bf16 %v1745, %v1745
        %v1754 = vpack.c.bf16 %v1746, %v1746
        %v1755 = vpack.c.bf16 %v1747, %v1747
        %v1756 = vpack.c.bf16 %v1748, %v1748
        %v1757 = vpack.c.bf16 %v1749, %v1749
        %v1758 = vpack.c.bf16 %v1750, %v1750
        %v1759 = vld [vmem:[%s1654 + $0x2] sm:$0xff]
        %v1760 = vld [vmem:[%s1654 + $0x12] sm:$0xff]
        %v1761 = vld [vmem:[%s1654 + $0x22] sm:$0xff]
        %v1762 = vld [vmem:[%s1654 + $0x32] sm:$0xff]
        %v1763 = vld [vmem:[%s1654 + $0x42] sm:$0xff]
        %v1764 = vld [vmem:[%s1654 + $0x52] sm:$0xff]
        %v1765 = vld [vmem:[%s1654 + $0x62] sm:$0xff]
        %v1766 = vld [vmem:[%s1654 + $0x72] sm:$0xff]
        %v1767 = vpack.c.bf16 %v1759, %v1759
        %v1768 = vpack.c.bf16 %v1760, %v1760
        %v1769 = vpack.c.bf16 %v1761, %v1761
        %v1770 = vpack.c.bf16 %v1762, %v1762
        %v1771 = vpack.c.bf16 %v1763, %v1763
        %v1772 = vpack.c.bf16 %v1764, %v1764
        %v1773 = vpack.c.bf16 %v1765, %v1765
        %v1774 = vpack.c.bf16 %v1766, %v1766
        %s1775 = scalar_lea.vmem [#allocation3], 32
        %v1776 = vld [vmem:[%s1775] sm:$0xff]
        %v1777 = vld [vmem:[%s1775 + $0x10] sm:$0xff]
        %v1778 = vld [vmem:[%s1775 + $0x20] sm:$0xff]
        %v1779 = vld [vmem:[%s1775 + $0x30] sm:$0xff]
        %v1780 = vld [vmem:[%s1775 + $0x40] sm:$0xff]
        %v1781 = vld [vmem:[%s1775 + $0x50] sm:$0xff]
        %v1782 = vld [vmem:[%s1775 + $0x60] sm:$0xff]
        %v1783 = vld [vmem:[%s1775 + $0x70] sm:$0xff]
        %v1784 = vpack.c.bf16 %v1776, %v1776
        %v1785 = vpack.c.bf16 %v1777, %v1777
        %v1786 = vpack.c.bf16 %v1778, %v1778
        %v1787 = vpack.c.bf16 %v1779, %v1779
        %v1788 = vpack.c.bf16 %v1780, %v1780
        %v1789 = vpack.c.bf16 %v1781, %v1781
        %v1790 = vpack.c.bf16 %v1782, %v1782
        %v1791 = vpack.c.bf16 %v1783, %v1783
        %v1792 = vld [vmem:[%s1775 + $0x1] sm:$0xff]
        %v1793 = vld [vmem:[%s1775 + $0x11] sm:$0xff]
        %v1794 = vld [vmem:[%s1775 + $0x21] sm:$0xff]
        %v1795 = vld [vmem:[%s1775 + $0x31] sm:$0xff]
        %v1796 = vld [vmem:[%s1775 + $0x41] sm:$0xff]
        %v1797 = vld [vmem:[%s1775 + $0x51] sm:$0xff]
        %v1798 = vld [vmem:[%s1775 + $0x61] sm:$0xff]
        %v1799 = vld [vmem:[%s1775 + $0x71] sm:$0xff]
        %v1800 = vpack.c.bf16 %v1792, %v1792
        %v1801 = vpack.c.bf16 %v1793, %v1793
        %v1802 = vpack.c.bf16 %v1794, %v1794
        %v1803 = vpack.c.bf16 %v1795, %v1795
        %v1804 = vpack.c.bf16 %v1796, %v1796
        %v1805 = vpack.c.bf16 %v1797, %v1797
        %v1806 = vpack.c.bf16 %v1798, %v1798
        %v1807 = vpack.c.bf16 %v1799, %v1799
        %v1808 = vld [vmem:[%s1775 + $0x2] sm:$0xff]
        %v1809 = vld [vmem:[%s1775 + $0x12] sm:$0xff]
        %v1810 = vld [vmem:[%s1775 + $0x22] sm:$0xff]
        %v1811 = vld [vmem:[%s1775 + $0x32] sm:$0xff]
        %v1812 = vld [vmem:[%s1775 + $0x42] sm:$0xff]
        %v1813 = vld [vmem:[%s1775 + $0x52] sm:$0xff]
        %v1814 = vld [vmem:[%s1775 + $0x62] sm:$0xff]
        %v1815 = vld [vmem:[%s1775 + $0x72] sm:$0xff]
        %v1816 = vpack.c.bf16 %v1808, %v1808
        %v1817 = vpack.c.bf16 %v1809, %v1809
        %v1818 = vpack.c.bf16 %v1810, %v1810
        %v1819 = vpack.c.bf16 %v1811, %v1811
        %v1820 = vpack.c.bf16 %v1812, %v1812
        %v1821 = vpack.c.bf16 %v1813, %v1813
        %v1822 = vpack.c.bf16 %v1814, %v1814
        %v1823 = vpack.c.bf16 %v1815, %v1815
        %v1832 = vunpack.c.l.b16 %v1687
        %v1833 = vunpack.c.l.b16 %v1688
        %v1834 = vunpack.c.l.b16 %v1689
        %v1835 = vunpack.c.l.b16 %v1690
        %v1836 = vunpack.c.l.b16 %v1691
        %v1837 = vunpack.c.l.b16 %v1692
        %v1838 = vunpack.c.l.b16 %v1693
        %v1839 = vunpack.c.l.b16 %v1694
        %v1840 = vpack.c.b16 %v1833, %v1832
        %v1841 = vpack.c.b16 %v1835, %v1834
        %v1842 = vpack.c.b16 %v1837, %v1836
        %v1843 = vpack.c.b16 %v1839, %v1838
        %v1856 = vunpack.c.l.b16 %v1703
        %v1857 = vunpack.c.l.b16 %v1704
        %v1858 = vunpack.c.l.b16 %v1705
        %v1859 = vunpack.c.l.b16 %v1706
        %v1860 = vunpack.c.l.b16 %v1707
        %v1861 = vunpack.c.l.b16 %v1708
        %v1862 = vunpack.c.l.b16 %v1709
        %v1863 = vunpack.c.l.b16 %v1710
        %v1864 = vpack.c.b16 %v1857, %v1856
        %v1865 = vpack.c.b16 %v1859, %v1858
        %v1866 = vpack.c.b16 %v1861, %v1860
        %v1867 = vpack.c.b16 %v1863, %v1862
        %v1880 = vunpack.c.l.b16 %v1719
        %v1881 = vunpack.c.l.b16 %v1720
        %v1882 = vunpack.c.l.b16 %v1721
        %v1883 = vunpack.c.l.b16 %v1722
        %v1884 = vunpack.c.l.b16 %v1723
        %v1885 = vunpack.c.l.b16 %v1724
        %v1886 = vunpack.c.l.b16 %v1725
        %v1887 = vunpack.c.l.b16 %v1726
        %v1888 = vpack.c.b16 %v1881, %v1880
        %v1889 = vpack.c.b16 %v1883, %v1882
        %v1890 = vpack.c.b16 %v1885, %v1884
        %v1891 = vpack.c.b16 %v1887, %v1886
        %v1904 = vunpack.c.l.b16 %v1735
        %v1905 = vunpack.c.l.b16 %v1736
        %v1906 = vunpack.c.l.b16 %v1737
        %v1907 = vunpack.c.l.b16 %v1738
        %v1908 = vunpack.c.l.b16 %v1739
        %v1909 = vunpack.c.l.b16 %v1740
        %v1910 = vunpack.c.l.b16 %v1741
        %v1911 = vunpack.c.l.b16 %v1742
        %v1912 = vpack.c.b16 %v1905, %v1904
        %v1913 = vpack.c.b16 %v1907, %v1906
        %v1914 = vpack.c.b16 %v1909, %v1908
        %v1915 = vpack.c.b16 %v1911, %v1910
        %v1928 = vunpack.c.l.b16 %v1751
        %v1929 = vunpack.c.l.b16 %v1752
        %v1930 = vunpack.c.l.b16 %v1753
        %v1931 = vunpack.c.l.b16 %v1754
        %v1932 = vunpack.c.l.b16 %v1755
        %v1933 = vunpack.c.l.b16 %v1756
        %v1934 = vunpack.c.l.b16 %v1757
        %v1935 = vunpack.c.l.b16 %v1758
        %v1936 = vpack.c.b16 %v1929, %v1928
        %v1937 = vpack.c.b16 %v1931, %v1930
        %v1938 = vpack.c.b16 %v1933, %v1932
        %v1939 = vpack.c.b16 %v1935, %v1934
        %v1952 = vunpack.c.l.b16 %v1767
        %v1953 = vunpack.c.l.b16 %v1768
        %v1954 = vunpack.c.l.b16 %v1769
        %v1955 = vunpack.c.l.b16 %v1770
        %v1956 = vunpack.c.l.b16 %v1771
        %v1957 = vunpack.c.l.b16 %v1772
        %v1958 = vunpack.c.l.b16 %v1773
        %v1959 = vunpack.c.l.b16 %v1774
        %v1960 = vpack.c.b16 %v1953, %v1952
        %v1961 = vpack.c.b16 %v1955, %v1954
        %v1962 = vpack.c.b16 %v1957, %v1956
        %v1963 = vpack.c.b16 %v1959, %v1958
        %v1976 = vunpack.c.l.b16 %v1784
        %v1977 = vunpack.c.l.b16 %v1785
        %v1978 = vunpack.c.l.b16 %v1786
        %v1979 = vunpack.c.l.b16 %v1787
        %v1980 = vunpack.c.l.b16 %v1788
        %v1981 = vunpack.c.l.b16 %v1789
        %v1982 = vunpack.c.l.b16 %v1790
        %v1983 = vunpack.c.l.b16 %v1791
        %v1984 = vpack.c.b16 %v1977, %v1976
        %v1985 = vpack.c.b16 %v1979, %v1978
        %v1986 = vpack.c.b16 %v1981, %v1980
        %v1987 = vpack.c.b16 %v1983, %v1982
        %v2000 = vunpack.c.l.b16 %v1800
        %v2001 = vunpack.c.l.b16 %v1801
        %v2002 = vunpack.c.l.b16 %v1802
        %v2003 = vunpack.c.l.b16 %v1803
        %v2004 = vunpack.c.l.b16 %v1804
        %v2005 = vunpack.c.l.b16 %v1805
        %v2006 = vunpack.c.l.b16 %v1806
        %v2007 = vunpack.c.l.b16 %v1807
        %v2008 = vpack.c.b16 %v2001, %v2000
        %v2009 = vpack.c.b16 %v2003, %v2002
        %v2010 = vpack.c.b16 %v2005, %v2004
        %v2011 = vpack.c.b16 %v2007, %v2006
        %v2024 = vunpack.c.l.b16 %v1816
        %v2025 = vunpack.c.l.b16 %v1817
        %v2026 = vunpack.c.l.b16 %v1818
        %v2027 = vunpack.c.l.b16 %v1819
        %v2028 = vunpack.c.l.b16 %v1820
        %v2029 = vunpack.c.l.b16 %v1821
        %v2030 = vunpack.c.l.b16 %v1822
        %v2031 = vunpack.c.l.b16 %v1823
        %v2032 = vpack.c.b16 %v2025, %v2024
        %v2033 = vpack.c.b16 %v2027, %v2026
        %v2034 = vpack.c.b16 %v2029, %v2028
        %v2035 = vpack.c.b16 %v2031, %v2030
        %v2040 = vld [vmem:[#allocation9] sm:$0xf]
        %v2041 = vld [vmem:[#allocation9 + $0x4] sm:$0xf]
        %v2042 = vld [vmem:[#allocation9 + $0x8] sm:$0xf]
        %v2043 = vld [vmem:[#allocation9 + $0xc] sm:$0xf]
        %v2044 = vld [vmem:[#allocation9 + $0x10] sm:$0xf]
        %v2045 = vld [vmem:[#allocation9 + $0x14] sm:$0xf]
        %v2046 = vld [vmem:[#allocation9 + $0x18] sm:$0xf]
        %v2047 = vld [vmem:[#allocation9 + $0x1c] sm:$0xf]
        %v2048 = vld [vmem:[#allocation9 + $0x20] sm:$0xf]
        %v2049 = vld [vmem:[#allocation9 + $0x24] sm:$0xf]
        %v2050 = vld [vmem:[#allocation9 + $0x28] sm:$0xf]
        %v2051 = vld [vmem:[#allocation9 + $0x2c] sm:$0xf]
        %v2052 = vld [vmem:[#allocation9 + $0x30] sm:$0xf]
        %v2053 = vld [vmem:[#allocation9 + $0x34] sm:$0xf]
        %v2054 = vld [vmem:[#allocation9 + $0x38] sm:$0xf]
        %v2055 = vld [vmem:[#allocation9 + $0x3c] sm:$0xf]
        %v2056 = vld [vmem:[#allocation9 + $0x40] sm:$0xf]
        %v2057 = vld [vmem:[#allocation9 + $0x44] sm:$0xf]
        %v2058 = vld [vmem:[#allocation9 + $0x48] sm:$0xf]
        %v2059 = vld [vmem:[#allocation9 + $0x4c] sm:$0xf]
        %v2060 = vld [vmem:[#allocation9 + $0x50] sm:$0xf]
        %v2061 = vld [vmem:[#allocation9 + $0x54] sm:$0xf]
        %v2062 = vld [vmem:[#allocation9 + $0x58] sm:$0xf]
        %v2063 = vld [vmem:[#allocation9 + $0x5c] sm:$0xf]
        %v2064 = vld [vmem:[#allocation9 + $0x60] sm:$0xf]
        %v2065 = vld [vmem:[#allocation9 + $0x64] sm:$0xf]
        %v2066 = vld [vmem:[#allocation9 + $0x68] sm:$0xf]
        %v2067 = vld [vmem:[#allocation9 + $0x6c] sm:$0xf]
        %v2068 = vld [vmem:[#allocation9 + $0x70] sm:$0xf]
        %v2069 = vld [vmem:[#allocation9 + $0x74] sm:$0xf]
        %v2070 = vld [vmem:[#allocation9 + $0x78] sm:$0xf]
        %v2071 = vld [vmem:[#allocation9 + $0x7c] sm:$0xf]
        %v2072 = vld [vmem:[#allocation9 + $0x80] sm:$0xf]
        %v2073 = vld [vmem:[#allocation9 + $0x84] sm:$0xf]
        %v2074 = vld [vmem:[#allocation9 + $0x88] sm:$0xf]
        %v2075 = vld [vmem:[#allocation9 + $0x8c] sm:$0xf]
        %v2076 = vld [vmem:[#allocation9 + $0x90] sm:$0xf]
        %v2077 = vld [vmem:[#allocation9 + $0x94] sm:$0xf]
        %v2078 = vld [vmem:[#allocation9 + $0x98] sm:$0xf]
        %v2079 = vld [vmem:[#allocation9 + $0x9c] sm:$0xf]
        %v2080 = vld [vmem:[#allocation9 + $0xa0] sm:$0xf]
        %v2081 = vld [vmem:[#allocation9 + $0xa4] sm:$0xf]
        %v2082 = vld [vmem:[#allocation9 + $0xa8] sm:$0xf]
        %v2083 = vld [vmem:[#allocation9 + $0xac] sm:$0xf]
        %v2084 = vld [vmem:[#allocation9 + $0xb0] sm:$0xf]
        %v2085 = vld [vmem:[#allocation9 + $0xb4] sm:$0xf]
        %v2086 = vld [vmem:[#allocation9 + $0xb8] sm:$0xf]
        %v2087 = vld [vmem:[#allocation9 + $0xbc] sm:$0xf]
        %v2088 = vld [vmem:[#allocation9 + $0xc0] sm:$0xf]
        %v2089 = vld [vmem:[#allocation9 + $0xc4] sm:$0xf]
        %v2090 = vld [vmem:[#allocation9 + $0xc8] sm:$0xf]
        %v2091 = vld [vmem:[#allocation9 + $0xcc] sm:$0xf]
        %v2092 = vld [vmem:[#allocation9 + $0xd0] sm:$0xf]
        %v2093 = vld [vmem:[#allocation9 + $0xd4] sm:$0xf]
        %v2094 = vld [vmem:[#allocation9 + $0xd8] sm:$0xf]
        %v2095 = vld [vmem:[#allocation9 + $0xdc] sm:$0xf]
        %v2096 = vld [vmem:[#allocation9 + $0xe0] sm:$0xf]
        %v2097 = vld [vmem:[#allocation9 + $0xe4] sm:$0xf]
        %v2098 = vld [vmem:[#allocation9 + $0xe8] sm:$0xf]
        %v2099 = vld [vmem:[#allocation9 + $0xec] sm:$0xf]
        %v2100 = vld [vmem:[#allocation9 + $0xf0] sm:$0xf]
        %v2101 = vld [vmem:[#allocation9 + $0xf4] sm:$0xf]
        %v2102 = vld [vmem:[#allocation9 + $0xf8] sm:$0xf]
        %v2103 = vld [vmem:[#allocation9 + $0xfc] sm:$0xf]
        %v2104 = vld [vmem:[#allocation9 + $0x100] sm:$0xf]
        %v2105 = vld [vmem:[#allocation9 + $0x104] sm:$0xf]
        %v2106 = vld [vmem:[#allocation9 + $0x108] sm:$0xf]
        %v2107 = vld [vmem:[#allocation9 + $0x10c] sm:$0xf]
        %v2108 = vld [vmem:[#allocation9 + $0x110] sm:$0xf]
        %v2109 = vld [vmem:[#allocation9 + $0x114] sm:$0xf]
        %v2110 = vld [vmem:[#allocation9 + $0x118] sm:$0xf]
        %v2111 = vld [vmem:[#allocation9 + $0x11c] sm:$0xf]
        %v2112 = vld [vmem:[#allocation9 + $0x120] sm:$0xf]
        %v2113 = vld [vmem:[#allocation9 + $0x124] sm:$0xf]
        %v2114 = vld [vmem:[#allocation9 + $0x128] sm:$0xf]
        %v2115 = vld [vmem:[#allocation9 + $0x12c] sm:$0xf]
        %v2116 = vld [vmem:[#allocation9 + $0x130] sm:$0xf]
        %v2117 = vld [vmem:[#allocation9 + $0x134] sm:$0xf]
        %v2118 = vld [vmem:[#allocation9 + $0x138] sm:$0xf]
        %v2119 = vld [vmem:[#allocation9 + $0x13c] sm:$0xf]
        %v2120 = vld [vmem:[#allocation9 + $0x140] sm:$0xf]
        %v2121 = vld [vmem:[#allocation9 + $0x144] sm:$0xf]
        %v2122 = vld [vmem:[#allocation9 + $0x148] sm:$0xf]
        %v2123 = vld [vmem:[#allocation9 + $0x14c] sm:$0xf]
        %v2124 = vld [vmem:[#allocation9 + $0x150] sm:$0xf]
        %v2125 = vld [vmem:[#allocation9 + $0x154] sm:$0xf]
        %v2126 = vld [vmem:[#allocation9 + $0x158] sm:$0xf]
        %v2127 = vld [vmem:[#allocation9 + $0x15c] sm:$0xf]
        %v2128 = vld [vmem:[#allocation9 + $0x160] sm:$0xf]
        %v2129 = vld [vmem:[#allocation9 + $0x164] sm:$0xf]
        %v2130 = vld [vmem:[#allocation9 + $0x168] sm:$0xf]
        %v2131 = vld [vmem:[#allocation9 + $0x16c] sm:$0xf]
        %v2132 = vld [vmem:[#allocation9 + $0x170] sm:$0xf]
        %v2133 = vld [vmem:[#allocation9 + $0x174] sm:$0xf]
        %v2134 = vld [vmem:[#allocation9 + $0x178] sm:$0xf]
        %v2135 = vld [vmem:[#allocation9 + $0x17c] sm:$0xf]
        %v2136 = vld [vmem:[#allocation9 + $0x180] sm:$0xf]
        %v2137 = vld [vmem:[#allocation9 + $0x184] sm:$0xf]
        %v2138 = vld [vmem:[#allocation9 + $0x188] sm:$0xf]
        %v2139 = vld [vmem:[#allocation9 + $0x18c] sm:$0xf]
        %v2140 = vld [vmem:[#allocation9 + $0x190] sm:$0xf]
        %v2141 = vld [vmem:[#allocation9 + $0x194] sm:$0xf]
        %v2142 = vld [vmem:[#allocation9 + $0x198] sm:$0xf]
        %v2143 = vld [vmem:[#allocation9 + $0x19c] sm:$0xf]
        %v2144 = vld [vmem:[#allocation9 + $0x1a0] sm:$0xf]
        %v2145 = vld [vmem:[#allocation9 + $0x1a4] sm:$0xf]
        %v2146 = vld [vmem:[#allocation9 + $0x1a8] sm:$0xf]
        %v2147 = vld [vmem:[#allocation9 + $0x1ac] sm:$0xf]
        %v2148 = vld [vmem:[#allocation9 + $0x1b0] sm:$0xf]
        %v2149 = vld [vmem:[#allocation9 + $0x1b4] sm:$0xf]
        %v2150 = vld [vmem:[#allocation9 + $0x1b8] sm:$0xf]
        %v2151 = vld [vmem:[#allocation9 + $0x1bc] sm:$0xf]
        %v2152 = vld [vmem:[#allocation9 + $0x1c0] sm:$0xf]
        %v2153 = vld [vmem:[#allocation9 + $0x1c4] sm:$0xf]
        %v2154 = vld [vmem:[#allocation9 + $0x1c8] sm:$0xf]
        %v2155 = vld [vmem:[#allocation9 + $0x1cc] sm:$0xf]
        %v2156 = vld [vmem:[#allocation9 + $0x1d0] sm:$0xf]
        %v2157 = vld [vmem:[#allocation9 + $0x1d4] sm:$0xf]
        %v2158 = vld [vmem:[#allocation9 + $0x1d8] sm:$0xf]
        %v2159 = vld [vmem:[#allocation9 + $0x1dc] sm:$0xf]
        %v2160 = vld [vmem:[#allocation9 + $0x1e0] sm:$0xf]
        %v2161 = vld [vmem:[#allocation9 + $0x1e4] sm:$0xf]
        %v2162 = vld [vmem:[#allocation9 + $0x1e8] sm:$0xf]
        %v2163 = vld [vmem:[#allocation9 + $0x1ec] sm:$0xf]
        %v2164 = vld [vmem:[#allocation9 + $0x1f0] sm:$0xf]
        %v2165 = vld [vmem:[#allocation9 + $0x1f4] sm:$0xf]
        %v2166 = vld [vmem:[#allocation9 + $0x1f8] sm:$0xf]
        %v2167 = vld [vmem:[#allocation9 + $0x1fc] sm:$0xf]
        %v2168 = vld [vmem:[#allocation9 + $0x200] sm:$0xf]
        %v2169 = vld [vmem:[#allocation9 + $0x204] sm:$0xf]
        %v2170 = vld [vmem:[#allocation9 + $0x208] sm:$0xf]
        %v2171 = vld [vmem:[#allocation9 + $0x20c] sm:$0xf]
        %v2172 = vld [vmem:[#allocation9 + $0x210] sm:$0xf]
        %v2173 = vld [vmem:[#allocation9 + $0x214] sm:$0xf]
        %v2174 = vld [vmem:[#allocation9 + $0x218] sm:$0xf]
        %v2175 = vld [vmem:[#allocation9 + $0x21c] sm:$0xf]
        %v2176 = vld [vmem:[#allocation9 + $0x220] sm:$0xf]
        %v2177 = vld [vmem:[#allocation9 + $0x224] sm:$0xf]
        %v2178 = vld [vmem:[#allocation9 + $0x228] sm:$0xf]
        %v2179 = vld [vmem:[#allocation9 + $0x22c] sm:$0xf]
        %v2180 = vld [vmem:[#allocation9 + $0x230] sm:$0xf]
        %v2181 = vld [vmem:[#allocation9 + $0x234] sm:$0xf]
        %v2182 = vld [vmem:[#allocation9 + $0x238] sm:$0xf]
        %v2183 = vld [vmem:[#allocation9 + $0x23c] sm:$0xf]
        %v2328 = vunpack.c.l.b16 %v2040
        %v2329 = vunpack.c.l.b16 %v2041
        %v2330 = vunpack.c.l.b16 %v2042
        %v2331 = vunpack.c.l.b16 %v2043
        %v2332 = vunpack.c.l.b16 %v2044
        %v2333 = vunpack.c.l.b16 %v2045
        %v2334 = vunpack.c.l.b16 %v2046
        %v2335 = vunpack.c.l.b16 %v2047
        %v2336 = vunpack.c.l.b16 %v2048
        %v2337 = vunpack.c.l.b16 %v2049
        %v2338 = vunpack.c.l.b16 %v2050
        %v2339 = vunpack.c.l.b16 %v2051
        %v2340 = vunpack.c.l.b16 %v2052
        %v2341 = vunpack.c.l.b16 %v2053
        %v2342 = vunpack.c.l.b16 %v2054
        %v2343 = vunpack.c.l.b16 %v2055
        %v2344 = vunpack.c.l.b16 %v2056
        %v2345 = vunpack.c.l.b16 %v2057
        %v2346 = vunpack.c.l.b16 %v2058
        %v2347 = vunpack.c.l.b16 %v2059
        %v2348 = vunpack.c.l.b16 %v2060
        %v2349 = vunpack.c.l.b16 %v2061
        %v2350 = vunpack.c.l.b16 %v2062
        %v2351 = vunpack.c.l.b16 %v2063
        %v2352 = vunpack.c.l.b16 %v2064
        %v2353 = vunpack.c.l.b16 %v2065
        %v2354 = vunpack.c.l.b16 %v2066
        %v2355 = vunpack.c.l.b16 %v2067
        %v2356 = vunpack.c.l.b16 %v2068
        %v2357 = vunpack.c.l.b16 %v2069
        %v2358 = vunpack.c.l.b16 %v2070
        %v2359 = vunpack.c.l.b16 %v2071
        %v2360 = vunpack.c.l.b16 %v2072
        %v2361 = vunpack.c.l.b16 %v2073
        %v2362 = vunpack.c.l.b16 %v2074
        %v2363 = vunpack.c.l.b16 %v2075
        %v2364 = vunpack.c.l.b16 %v2076
        %v2365 = vunpack.c.l.b16 %v2077
        %v2366 = vunpack.c.l.b16 %v2078
        %v2367 = vunpack.c.l.b16 %v2079
        %v2368 = vunpack.c.l.b16 %v2080
        %v2369 = vunpack.c.l.b16 %v2081
        %v2370 = vunpack.c.l.b16 %v2082
        %v2371 = vunpack.c.l.b16 %v2083
        %v2372 = vunpack.c.l.b16 %v2084
        %v2373 = vunpack.c.l.b16 %v2085
        %v2374 = vunpack.c.l.b16 %v2086
        %v2375 = vunpack.c.l.b16 %v2087
        %v2376 = vunpack.c.l.b16 %v2088
        %v2377 = vunpack.c.l.b16 %v2089
        %v2378 = vunpack.c.l.b16 %v2090
        %v2379 = vunpack.c.l.b16 %v2091
        %v2380 = vunpack.c.l.b16 %v2092
        %v2381 = vunpack.c.l.b16 %v2093
        %v2382 = vunpack.c.l.b16 %v2094
        %v2383 = vunpack.c.l.b16 %v2095
        %v2384 = vunpack.c.l.b16 %v2096
        %v2385 = vunpack.c.l.b16 %v2097
        %v2386 = vunpack.c.l.b16 %v2098
        %v2387 = vunpack.c.l.b16 %v2099
        %v2388 = vunpack.c.l.b16 %v2100
        %v2389 = vunpack.c.l.b16 %v2101
        %v2390 = vunpack.c.l.b16 %v2102
        %v2391 = vunpack.c.l.b16 %v2103
        %v2392 = vunpack.c.l.b16 %v2104
        %v2393 = vunpack.c.l.b16 %v2105
        %v2394 = vunpack.c.l.b16 %v2106
        %v2395 = vunpack.c.l.b16 %v2107
        %v2396 = vunpack.c.l.b16 %v2108
        %v2397 = vunpack.c.l.b16 %v2109
        %v2398 = vunpack.c.l.b16 %v2110
        %v2399 = vunpack.c.l.b16 %v2111
        %v2400 = vunpack.c.l.b16 %v2112
        %v2401 = vunpack.c.l.b16 %v2113
        %v2402 = vunpack.c.l.b16 %v2114
        %v2403 = vunpack.c.l.b16 %v2115
        %v2404 = vunpack.c.l.b16 %v2116
        %v2405 = vunpack.c.l.b16 %v2117
        %v2406 = vunpack.c.l.b16 %v2118
        %v2407 = vunpack.c.l.b16 %v2119
        %v2408 = vunpack.c.l.b16 %v2120
        %v2409 = vunpack.c.l.b16 %v2121
        %v2410 = vunpack.c.l.b16 %v2122
        %v2411 = vunpack.c.l.b16 %v2123
        %v2412 = vunpack.c.l.b16 %v2124
        %v2413 = vunpack.c.l.b16 %v2125
        %v2414 = vunpack.c.l.b16 %v2126
        %v2415 = vunpack.c.l.b16 %v2127
        %v2416 = vunpack.c.l.b16 %v2128
        %v2417 = vunpack.c.l.b16 %v2129
        %v2418 = vunpack.c.l.b16 %v2130
        %v2419 = vunpack.c.l.b16 %v2131
        %v2420 = vunpack.c.l.b16 %v2132
        %v2421 = vunpack.c.l.b16 %v2133
        %v2422 = vunpack.c.l.b16 %v2134
        %v2423 = vunpack.c.l.b16 %v2135
        %v2424 = vunpack.c.l.b16 %v2136
        %v2425 = vunpack.c.l.b16 %v2137
        %v2426 = vunpack.c.l.b16 %v2138
        %v2427 = vunpack.c.l.b16 %v2139
        %v2428 = vunpack.c.l.b16 %v2140
        %v2429 = vunpack.c.l.b16 %v2141
        %v2430 = vunpack.c.l.b16 %v2142
        %v2431 = vunpack.c.l.b16 %v2143
        %v2432 = vunpack.c.l.b16 %v2144
        %v2433 = vunpack.c.l.b16 %v2145
        %v2434 = vunpack.c.l.b16 %v2146
        %v2435 = vunpack.c.l.b16 %v2147
        %v2436 = vunpack.c.l.b16 %v2148
        %v2437 = vunpack.c.l.b16 %v2149
        %v2438 = vunpack.c.l.b16 %v2150
        %v2439 = vunpack.c.l.b16 %v2151
        %v2440 = vunpack.c.l.b16 %v2152
        %v2441 = vunpack.c.l.b16 %v2153
        %v2442 = vunpack.c.l.b16 %v2154
        %v2443 = vunpack.c.l.b16 %v2155
        %v2444 = vunpack.c.l.b16 %v2156
        %v2445 = vunpack.c.l.b16 %v2157
        %v2446 = vunpack.c.l.b16 %v2158
        %v2447 = vunpack.c.l.b16 %v2159
        %v2448 = vunpack.c.l.b16 %v2160
        %v2449 = vunpack.c.l.b16 %v2161
        %v2450 = vunpack.c.l.b16 %v2162
        %v2451 = vunpack.c.l.b16 %v2163
        %v2452 = vunpack.c.l.b16 %v2164
        %v2453 = vunpack.c.l.b16 %v2165
        %v2454 = vunpack.c.l.b16 %v2166
        %v2455 = vunpack.c.l.b16 %v2167
        %v2456 = vunpack.c.l.b16 %v2168
        %v2457 = vunpack.c.l.b16 %v2169
        %v2458 = vunpack.c.l.b16 %v2170
        %v2459 = vunpack.c.l.b16 %v2171
        %v2460 = vunpack.c.l.b16 %v2172
        %v2461 = vunpack.c.l.b16 %v2173
        %v2462 = vunpack.c.l.b16 %v2174
        %v2463 = vunpack.c.l.b16 %v2175
        %v2464 = vunpack.c.l.b16 %v2176
        %v2465 = vunpack.c.l.b16 %v2177
        %v2466 = vunpack.c.l.b16 %v2178
        %v2467 = vunpack.c.l.b16 %v2179
        %v2468 = vunpack.c.l.b16 %v2180
        %v2469 = vunpack.c.l.b16 %v2181
        %v2470 = vunpack.c.l.b16 %v2182
        %v2471 = vunpack.c.l.b16 %v2183
        %v2472 = vpack.c.b16 %v2329, %v2328
        %v2473 = vpack.c.b16 %v2331, %v2330
        %v2474 = vpack.c.b16 %v2333, %v2332
        %v2475 = vpack.c.b16 %v2335, %v2334
        %v2476 = vpack.c.b16 %v2337, %v2336
        %v2477 = vpack.c.b16 %v2339, %v2338
        %v2478 = vpack.c.b16 %v2341, %v2340
        %v2479 = vpack.c.b16 %v2343, %v2342
        %v2480 = vpack.c.b16 %v2345, %v2344
        %v2481 = vpack.c.b16 %v2347, %v2346
        %v2482 = vpack.c.b16 %v2349, %v2348
        %v2483 = vpack.c.b16 %v2351, %v2350
        %v2484 = vpack.c.b16 %v2353, %v2352
        %v2485 = vpack.c.b16 %v2355, %v2354
        %v2486 = vpack.c.b16 %v2357, %v2356
        %v2487 = vpack.c.b16 %v2359, %v2358
        %v2488 = vpack.c.b16 %v2361, %v2360
        %v2489 = vpack.c.b16 %v2363, %v2362
        %v2490 = vpack.c.b16 %v2365, %v2364
        %v2491 = vpack.c.b16 %v2367, %v2366
        %v2492 = vpack.c.b16 %v2369, %v2368
        %v2493 = vpack.c.b16 %v2371, %v2370
        %v2494 = vpack.c.b16 %v2373, %v2372
        %v2495 = vpack.c.b16 %v2375, %v2374
        %v2496 = vpack.c.b16 %v2377, %v2376
        %v2497 = vpack.c.b16 %v2379, %v2378
        %v2498 = vpack.c.b16 %v2381, %v2380
        %v2499 = vpack.c.b16 %v2383, %v2382
        %v2500 = vpack.c.b16 %v2385, %v2384
        %v2501 = vpack.c.b16 %v2387, %v2386
        %v2502 = vpack.c.b16 %v2389, %v2388
        %v2503 = vpack.c.b16 %v2391, %v2390
        %v2504 = vpack.c.b16 %v2393, %v2392
        %v2505 = vpack.c.b16 %v2395, %v2394
        %v2506 = vpack.c.b16 %v2397, %v2396
        %v2507 = vpack.c.b16 %v2399, %v2398
        %v2508 = vpack.c.b16 %v2401, %v2400
        %v2509 = vpack.c.b16 %v2403, %v2402
        %v2510 = vpack.c.b16 %v2405, %v2404
        %v2511 = vpack.c.b16 %v2407, %v2406
        %v2512 = vpack.c.b16 %v2409, %v2408
        %v2513 = vpack.c.b16 %v2411, %v2410
        %v2514 = vpack.c.b16 %v2413, %v2412
        %v2515 = vpack.c.b16 %v2415, %v2414
        %v2516 = vpack.c.b16 %v2417, %v2416
        %v2517 = vpack.c.b16 %v2419, %v2418
        %v2518 = vpack.c.b16 %v2421, %v2420
        %v2519 = vpack.c.b16 %v2423, %v2422
        %v2520 = vpack.c.b16 %v2425, %v2424
        %v2521 = vpack.c.b16 %v2427, %v2426
        %v2522 = vpack.c.b16 %v2429, %v2428
        %v2523 = vpack.c.b16 %v2431, %v2430
        %v2524 = vpack.c.b16 %v2433, %v2432
        %v2525 = vpack.c.b16 %v2435, %v2434
        %v2526 = vpack.c.b16 %v2437, %v2436
        %v2527 = vpack.c.b16 %v2439, %v2438
        %v2528 = vpack.c.b16 %v2441, %v2440
        %v2529 = vpack.c.b16 %v2443, %v2442
        %v2530 = vpack.c.b16 %v2445, %v2444
        %v2531 = vpack.c.b16 %v2447, %v2446
        %v2532 = vpack.c.b16 %v2449, %v2448
        %v2533 = vpack.c.b16 %v2451, %v2450
        %v2534 = vpack.c.b16 %v2453, %v2452
        %v2535 = vpack.c.b16 %v2455, %v2454
        %v2536 = vpack.c.b16 %v2457, %v2456
        %v2537 = vpack.c.b16 %v2459, %v2458
        %v2538 = vpack.c.b16 %v2461, %v2460
        %v2539 = vpack.c.b16 %v2463, %v2462
        %v2540 = vpack.c.b16 %v2465, %v2464
        %v2541 = vpack.c.b16 %v2467, %v2466
        %v2542 = vpack.c.b16 %v2469, %v2468
        %v2543 = vpack.c.b16 %v2471, %v2470
        %2616 = vmatpush.bf16.msra.mxu0 %v2479
        %2617 = vmatpush.bf16.msra.mxu0 %v2478
        %2618 = vmatpush.bf16.msra.mxu0 %v2477
        %2619 = vmatpush.bf16.msra.mxu0 %v2476
        %2620 = vmatpush.bf16.msra.mxu0 %v2475
        %2621 = vmatpush.bf16.msra.mxu0 %v2474
        %2622 = vmatpush.bf16.msra.mxu0 %v2473
        %2623 = vmatpush.bf16.msra.mxu0 %v2472
        %2624 = vmatmul.bf16.gmra.mxu0 %v1840
        %v2625 = vpop.f32.mrf.mxu0
        %v2626 = vadd.f32 0.0, %v2625
        %v2627 = vpop.f32.mrf.mxu0
        %v2628 = vadd.f32 0.0, %v2627
        %2629 = vmatmul.bf16.gmra.mxu0 %v1841
        %v2630 = vpop.f32.mrf.mxu0
        %v2631 = vadd.f32 0.0, %v2630
        %v2632 = vpop.f32.mrf.mxu0
        %v2633 = vadd.f32 0.0, %v2632
        %2634 = vmatmul.bf16.gmra.mxu0 %v1842
        %v2635 = vpop.f32.mrf.mxu0
        %v2636 = vadd.f32 0.0, %v2635
        %v2637 = vpop.f32.mrf.mxu0
        %v2638 = vadd.f32 0.0, %v2637
        %2639 = vmatmul.bf16.gmra.mxu0 %v1843
        %v2640 = vpop.f32.mrf.mxu0
        %v2641 = vadd.f32 0.0, %v2640
        %v2642 = vpop.f32.mrf.mxu0
        %v2643 = vadd.f32 0.0, %v2642
        %2644 = vdwg.mxu0
        %2645 = vmatpush.bf16.msra.mxu0 %v2487
        %2646 = vmatpush.bf16.msra.mxu0 %v2486
        %2647 = vmatpush.bf16.msra.mxu0 %v2485
        %2648 = vmatpush.bf16.msra.mxu0 %v2484
        %2649 = vmatpush.bf16.msra.mxu0 %v2483
        %2650 = vmatpush.bf16.msra.mxu0 %v2482
        %2651 = vmatpush.bf16.msra.mxu0 %v2481
        %2652 = vmatpush.bf16.msra.mxu0 %v2480
        %2653 = vmatmul.bf16.gmra.mxu0 %v1864
        %v2654 = vpop.f32.mrf.mxu0
        %v2655 = vadd.f32 %v2626, %v2654
        %v2656 = vpop.f32.mrf.mxu0
        %v2657 = vadd.f32 %v2628, %v2656
        %2658 = vmatmul.bf16.gmra.mxu0 %v1865
        %v2659 = vpop.f32.mrf.mxu0
        %v2660 = vadd.f32 %v2631, %v2659
        %v2661 = vpop.f32.mrf.mxu0
        %v2662 = vadd.f32 %v2633, %v2661
        %2663 = vmatmul.bf16.gmra.mxu0 %v1866
        %v2664 = vpop.f32.mrf.mxu0
        %v2665 = vadd.f32 %v2636, %v2664
        %v2666 = vpop.f32.mrf.mxu0
        %v2667 = vadd.f32 %v2638, %v2666
        %2668 = vmatmul.bf16.gmra.mxu0 %v1867
        %v2669 = vpop.f32.mrf.mxu0
        %v2670 = vadd.f32 %v2641, %v2669
        %v2671 = vpop.f32.mrf.mxu0
        %v2672 = vadd.f32 %v2643, %v2671
        %2673 = vdwg.mxu0
        %2674 = vmatpush.bf16.msra.mxu0 %v2495
        %2675 = vmatpush.bf16.msra.mxu0 %v2494
        %2676 = vmatpush.bf16.msra.mxu0 %v2493
        %2677 = vmatpush.bf16.msra.mxu0 %v2492
        %2678 = vmatpush.bf16.msra.mxu0 %v2491
        %2679 = vmatpush.bf16.msra.mxu0 %v2490
        %2680 = vmatpush.bf16.msra.mxu0 %v2489
        %2681 = vmatpush.bf16.msra.mxu0 %v2488
        %2682 = vmatmul.bf16.gmra.mxu0 %v1888
        %v2683 = vpop.f32.mrf.mxu0
        %v2684 = vadd.f32 %v2655, %v2683
        %v2685 = vpop.f32.mrf.mxu0
        %v2686 = vadd.f32 %v2657, %v2685
        %2687 = vmatmul.bf16.gmra.mxu0 %v1889
        %v2688 = vpop.f32.mrf.mxu0
        %v2689 = vadd.f32 %v2660, %v2688
        %v2690 = vpop.f32.mrf.mxu0
        %v2691 = vadd.f32 %v2662, %v2690
        %2692 = vmatmul.bf16.gmra.mxu0 %v1890
        %v2693 = vpop.f32.mrf.mxu0
        %v2694 = vadd.f32 %v2665, %v2693
        %v2695 = vpop.f32.mrf.mxu0
        %v2696 = vadd.f32 %v2667, %v2695
        %2697 = vmatmul.bf16.gmra.mxu0 %v1891
        %v2698 = vpop.f32.mrf.mxu0
        %v2699 = vadd.f32 %v2670, %v2698
        %v2700 = vpop.f32.mrf.mxu0
        %v2701 = vadd.f32 %v2672, %v2700
        %2702 = vdwg.mxu0
        %2703 = vmatpush.bf16.msra.mxu0 %v2503
        %2704 = vmatpush.bf16.msra.mxu0 %v2502
        %2705 = vmatpush.bf16.msra.mxu0 %v2501
        %2706 = vmatpush.bf16.msra.mxu0 %v2500
        %2707 = vmatpush.bf16.msra.mxu0 %v2499
        %2708 = vmatpush.bf16.msra.mxu0 %v2498
        %2709 = vmatpush.bf16.msra.mxu0 %v2497
        %2710 = vmatpush.bf16.msra.mxu0 %v2496
        %2711 = vmatmul.bf16.gmra.mxu0 %v1912
        %v2712 = vpop.f32.mrf.mxu0
        %v2713 = vadd.f32 %v2684, %v2712
        %v2714 = vpop.f32.mrf.mxu0
        %v2715 = vadd.f32 %v2686, %v2714
        %2716 = vmatmul.bf16.gmra.mxu0 %v1913
        %v2717 = vpop.f32.mrf.mxu0
        %v2718 = vadd.f32 %v2689, %v2717
        %v2719 = vpop.f32.mrf.mxu0
        %v2720 = vadd.f32 %v2691, %v2719
        %2721 = vmatmul.bf16.gmra.mxu0 %v1914
        %v2722 = vpop.f32.mrf.mxu0
        %v2723 = vadd.f32 %v2694, %v2722
        %v2724 = vpop.f32.mrf.mxu0
        %v2725 = vadd.f32 %v2696, %v2724
        %2726 = vmatmul.bf16.gmra.mxu0 %v1915
        %v2727 = vpop.f32.mrf.mxu0
        %v2728 = vadd.f32 %v2699, %v2727
        %v2729 = vpop.f32.mrf.mxu0
        %v2730 = vadd.f32 %v2701, %v2729
        %2731 = vdwg.mxu0
        %2732 = vmatpush.bf16.msra.mxu0 %v2511
        %2733 = vmatpush.bf16.msra.mxu0 %v2510
        %2734 = vmatpush.bf16.msra.mxu0 %v2509
        %2735 = vmatpush.bf16.msra.mxu0 %v2508
        %2736 = vmatpush.bf16.msra.mxu0 %v2507
        %2737 = vmatpush.bf16.msra.mxu0 %v2506
        %2738 = vmatpush.bf16.msra.mxu0 %v2505
        %2739 = vmatpush.bf16.msra.mxu0 %v2504
        %2740 = vmatmul.bf16.gmra.mxu0 %v1936
        %v2741 = vpop.f32.mrf.mxu0
        %v2742 = vadd.f32 %v2713, %v2741
        %v2743 = vpop.f32.mrf.mxu0
        %v2744 = vadd.f32 %v2715, %v2743
        %2745 = vmatmul.bf16.gmra.mxu0 %v1937
        %v2746 = vpop.f32.mrf.mxu0
        %v2747 = vadd.f32 %v2718, %v2746
        %v2748 = vpop.f32.mrf.mxu0
        %v2749 = vadd.f32 %v2720, %v2748
        %2750 = vmatmul.bf16.gmra.mxu0 %v1938
        %v2751 = vpop.f32.mrf.mxu0
        %v2752 = vadd.f32 %v2723, %v2751
        %v2753 = vpop.f32.mrf.mxu0
        %v2754 = vadd.f32 %v2725, %v2753
        %2755 = vmatmul.bf16.gmra.mxu0 %v1939
        %v2756 = vpop.f32.mrf.mxu0
        %v2757 = vadd.f32 %v2728, %v2756
        %v2758 = vpop.f32.mrf.mxu0
        %v2759 = vadd.f32 %v2730, %v2758
        %2760 = vdwg.mxu0
        %2761 = vmatpush.bf16.msra.mxu0 %v2519
        %2762 = vmatpush.bf16.msra.mxu0 %v2518
        %2763 = vmatpush.bf16.msra.mxu0 %v2517
        %2764 = vmatpush.bf16.msra.mxu0 %v2516
        %2765 = vmatpush.bf16.msra.mxu0 %v2515
        %2766 = vmatpush.bf16.msra.mxu0 %v2514
        %2767 = vmatpush.bf16.msra.mxu0 %v2513
        %2768 = vmatpush.bf16.msra.mxu0 %v2512
        %2769 = vmatmul.bf16.gmra.mxu0 %v1960
        %v2770 = vpop.f32.mrf.mxu0
        %v2771 = vadd.f32 %v2742, %v2770
        %v2772 = vpop.f32.mrf.mxu0
        %v2773 = vadd.f32 %v2744, %v2772
        %2774 = vmatmul.bf16.gmra.mxu0 %v1961
        %v2775 = vpop.f32.mrf.mxu0
        %v2776 = vadd.f32 %v2747, %v2775
        %v2777 = vpop.f32.mrf.mxu0
        %v2778 = vadd.f32 %v2749, %v2777
        %2779 = vmatmul.bf16.gmra.mxu0 %v1962
        %v2780 = vpop.f32.mrf.mxu0
        %v2781 = vadd.f32 %v2752, %v2780
        %v2782 = vpop.f32.mrf.mxu0
        %v2783 = vadd.f32 %v2754, %v2782
        %2784 = vmatmul.bf16.gmra.mxu0 %v1963
        %v2785 = vpop.f32.mrf.mxu0
        %v2786 = vadd.f32 %v2757, %v2785
        %v2787 = vpop.f32.mrf.mxu0
        %v2788 = vadd.f32 %v2759, %v2787
        %2789 = vdwg.mxu0
        %2790 = vmatpush.bf16.msra.mxu0 %v2527
        %2791 = vmatpush.bf16.msra.mxu0 %v2526
        %2792 = vmatpush.bf16.msra.mxu0 %v2525
        %2793 = vmatpush.bf16.msra.mxu0 %v2524
        %2794 = vmatpush.bf16.msra.mxu0 %v2523
        %2795 = vmatpush.bf16.msra.mxu0 %v2522
        %2796 = vmatpush.bf16.msra.mxu0 %v2521
        %2797 = vmatpush.bf16.msra.mxu0 %v2520
        %2798 = vmatmul.bf16.gmra.mxu0 %v1984
        %v2799 = vpop.f32.mrf.mxu0
        %v2800 = vadd.f32 %v2771, %v2799
        %v2801 = vpop.f32.mrf.mxu0
        %v2802 = vadd.f32 %v2773, %v2801
        %2803 = vmatmul.bf16.gmra.mxu0 %v1985
        %v2804 = vpop.f32.mrf.mxu0
        %v2805 = vadd.f32 %v2776, %v2804
        %v2806 = vpop.f32.mrf.mxu0
        %v2807 = vadd.f32 %v2778, %v2806
        %2808 = vmatmul.bf16.gmra.mxu0 %v1986
        %v2809 = vpop.f32.mrf.mxu0
        %v2810 = vadd.f32 %v2781, %v2809
        %v2811 = vpop.f32.mrf.mxu0
        %v2812 = vadd.f32 %v2783, %v2811
        %2813 = vmatmul.bf16.gmra.mxu0 %v1987
        %v2814 = vpop.f32.mrf.mxu0
        %v2815 = vadd.f32 %v2786, %v2814
        %v2816 = vpop.f32.mrf.mxu0
        %v2817 = vadd.f32 %v2788, %v2816
        %2818 = vdwg.mxu0
        %2819 = vmatpush.bf16.msra.mxu0 %v2535
        %2820 = vmatpush.bf16.msra.mxu0 %v2534
        %2821 = vmatpush.bf16.msra.mxu0 %v2533
        %2822 = vmatpush.bf16.msra.mxu0 %v2532
        %2823 = vmatpush.bf16.msra.mxu0 %v2531
        %2824 = vmatpush.bf16.msra.mxu0 %v2530
        %2825 = vmatpush.bf16.msra.mxu0 %v2529
        %2826 = vmatpush.bf16.msra.mxu0 %v2528
        %2827 = vmatmul.bf16.gmra.mxu0 %v2008
        %v2828 = vpop.f32.mrf.mxu0
        %v2829 = vadd.f32 %v2800, %v2828
        %v2830 = vpop.f32.mrf.mxu0
        %v2831 = vadd.f32 %v2802, %v2830
        %2832 = vmatmul.bf16.gmra.mxu0 %v2009
        %v2833 = vpop.f32.mrf.mxu0
        %v2834 = vadd.f32 %v2805, %v2833
        %v2835 = vpop.f32.mrf.mxu0
        %v2836 = vadd.f32 %v2807, %v2835
        %2837 = vmatmul.bf16.gmra.mxu0 %v2010
        %v2838 = vpop.f32.mrf.mxu0
        %v2839 = vadd.f32 %v2810, %v2838
        %v2840 = vpop.f32.mrf.mxu0
        %v2841 = vadd.f32 %v2812, %v2840
        %2842 = vmatmul.bf16.gmra.mxu0 %v2011
        %v2843 = vpop.f32.mrf.mxu0
        %v2844 = vadd.f32 %v2815, %v2843
        %v2845 = vpop.f32.mrf.mxu0
        %v2846 = vadd.f32 %v2817, %v2845
        %2847 = vdwg.mxu0
        %2848 = vmatpush.bf16.msra.mxu0 %v2543
        %2849 = vmatpush.bf16.msra.mxu0 %v2542
        %2850 = vmatpush.bf16.msra.mxu0 %v2541
        %2851 = vmatpush.bf16.msra.mxu0 %v2540
        %2852 = vmatpush.bf16.msra.mxu0 %v2539
        %2853 = vmatpush.bf16.msra.mxu0 %v2538
        %2854 = vmatpush.bf16.msra.mxu0 %v2537
        %2855 = vmatpush.bf16.msra.mxu0 %v2536
        %2856 = vmatmul.bf16.gmra.mxu0 %v2032
        %v2857 = vpop.f32.mrf.mxu0
        %v2858 = vadd.f32 %v2829, %v2857
        %v2859 = vpop.f32.mrf.mxu0
        %v2860 = vadd.f32 %v2831, %v2859
        %2861 = vmatmul.bf16.gmra.mxu0 %v2033
        %v2862 = vpop.f32.mrf.mxu0
        %v2863 = vadd.f32 %v2834, %v2862
        %v2864 = vpop.f32.mrf.mxu0
        %v2865 = vadd.f32 %v2836, %v2864
        %2866 = vmatmul.bf16.gmra.mxu0 %v2034
        %v2867 = vpop.f32.mrf.mxu0
        %v2868 = vadd.f32 %v2839, %v2867
        %v2869 = vpop.f32.mrf.mxu0
        %v2870 = vadd.f32 %v2841, %v2869
        %2871 = vmatmul.bf16.gmra.mxu0 %v2035
        %v2872 = vpop.f32.mrf.mxu0
        %v2873 = vadd.f32 %v2844, %v2872
        %v2874 = vpop.f32.mrf.mxu0
        %v2875 = vadd.f32 %v2846, %v2874
        %2876 = vdwg.mxu0
        %v2877 = vld [vmem:[%s5] sm:$0x1]
        %v2879 = vperm.slane %v2877, 0
        %v2881 = vmul.f32 %v2858, %v2879
        %v2882 = vmul.f32 %v2860, %v2879
        %v2883 = vmul.f32 %v2863, %v2879
        %v2884 = vmul.f32 %v2865, %v2879
        %v2885 = vmul.f32 %v2868, %v2879
        %v2886 = vmul.f32 %v2870, %v2879
        %v2887 = vmul.f32 %v2873, %v2879
        %v2888 = vmul.f32 %v2875, %v2879
        %v2889 = vld [vmem:[%s6] sm:$0x1]
        %v2891 = vperm.slane %v2889, 0
        %v2893 = vadd.f32 %v2881, %v2891
        %v2894 = vadd.f32 %v2882, %v2891
        %v2895 = vadd.f32 %v2883, %v2891
        %v2896 = vadd.f32 %v2884, %v2891
        %v2897 = vadd.f32 %v2885, %v2891
        %v2898 = vadd.f32 %v2886, %v2891
        %v2899 = vadd.f32 %v2887, %v2891
        %v2900 = vadd.f32 %v2888, %v2891
        %v2901 = vmax.f32 %v2893, 0.0
        %v2902 = vmax.f32 %v2894, 0.0
        %v2903 = vmax.f32 %v2895, 0.0
        %v2904 = vmax.f32 %v2896, 0.0
        %v2905 = vmax.f32 %v2897, 0.0
        %v2906 = vmax.f32 %v2898, 0.0
        %v2907 = vmax.f32 %v2899, 0.0
        %v2908 = vmax.f32 %v2900, 0.0
        %2909 = vst [vmem:[%s331] sm:$0xff] %v2901
        %2910 = vst [vmem:[%s331 + $0x8] sm:$0xff] %v2902
        %2911 = vst [vmem:[%s331 + $0x10] sm:$0xff] %v2903
        %2912 = vst [vmem:[%s331 + $0x18] sm:$0xff] %v2904
        %2913 = vst [vmem:[%s331 + $0x20] sm:$0xff] %v2905
        %2914 = vst [vmem:[%s331 + $0x28] sm:$0xff] %v2906
        %2915 = vst [vmem:[%s331 + $0x30] sm:$0xff] %v2907
        %2916 = vst [vmem:[%s331 + $0x38] sm:$0xff] %v2908
        %s2917 = sand.u32 %s185, 1
        %s2918 = scalar_lea.sflag [#allocation6], %s2917
        %s2919 = sand.u32 %s185, 1
        %s2920 = smul.addr %s2919, 64
        %s2921 = scalar_lea.vmem [#allocation10], %s2920
        // Predicated region
        $region61: #{tpu_custom_call.1} parent=47 // pred_check
          %p2922 = pneg %p195
        $region62: #{tpu_custom_call.1} parent=47 // pred_check_branch
          %2924 = sbr.rel (%p2922) target = $region64
        $region63: #{tpu_custom_call.1} parent=47 // pred_region
          %2926 = vsyncadd %s2918, 0
          %s2927 = smul.addr %s25, 8
          %s2928 = smul.addr %s2927, 8
          %s2929 = scalar_lea.hbm %s7, %s2928
          %s2930 = sshll.u32 %s2921, 4
          %s2931 = int_to_ptr.vmem [resolvable:$true] %s2930
          %s2932 = sshll.u32 %s2929, 4
          %s2933 = int_to_ptr.hbm [resolvable:$true] %s2932
          %2938 = dma.vmem_to_hbm [thread:$0]  %s2931, 1024, %s2933, %s2918, 128, 128, 8
        $region64: #{tpu_custom_call.1} parent=47 // pred_fallthru
          _
      $region48: #{tpu_custom_call.1} parent=5 // pred_fallthru
        _
      %p2939 = scmp.le.s32.totalorder 2, %s20
      // Predicated region
      $region65: #{tpu_custom_call.1} parent=5 // pred_check
        %p2940 = pneg %p2939
      $region66: #{tpu_custom_call.1} parent=5 // pred_check_branch
        %2942 = sbr.rel (%p2940) target = $region68
      $region67: #{tpu_custom_call.1} parent=5 // pred_region
        %s2943 = ssub.s32 %s20, 2
        // Predicated region
        $region69: #{tpu_custom_call.1} parent=67 // pred_check
          %p2944 = pneg %p201
        $region70: #{tpu_custom_call.1} parent=67 // pred_check_branch
          %2946 = sbr.rel (%p2944) target = $region72
        $region71: #{tpu_custom_call.1} parent=67 // pred_region
          %s2947 = sand.u32 %s186, 1
          %s2948 = scalar_lea.sflag [#allocation6], %s2947
          %s2949 = sand.u32 %s186, 1
          %s2950 = smul.addr %s2949, 64
          %s2951 = scalar_lea.vmem [#allocation10], %s2950
          %2953 = dma.done %s2948, 1024
        $region72: #{tpu_custom_call.1} parent=67 // pred_fallthru
          _
      $region68: #{tpu_custom_call.1} parent=5 // pred_fallthru
        _
    $region6: #{tpu_custom_call.1} parent=1 // loop_footer
      %s24 = sadd.s32 1, %s20
    $region7: #{tpu_custom_call.1} parent=1 // loop_footer_branch
      %19 = sbr.rel target = $region3
    $region8: #{tpu_custom_call.1} parent=1 // loop_exit
      _
    %2954 = vsyncpa [#allocation5], 1
    %s2955 = scalar_lea.sflag [#allocation5], 1
    %2956 = vsyncpa %s2955, 1
    %2957 = vsyncpa [#allocation8], 1
    %2958 = vsyncpa [#allocation6], 1
    %s2959 = scalar_lea.sflag [#allocation6], 1
    %2960 = vsyncpa %s2959, 1

</llo_original>
